<compile_context>
chip_gen: v6e
topology: v6e:2x2x1
jax: 0.10.0
libtpu: 0.0.40
codegen_flags: <defaults>
</compile_context>

<pallas_src>
import functools
import math

import jax
import jax.numpy as jnp
from jax.experimental import pallas as pl
from jax.experimental.pallas import tpu as pltpu


_VMEM_LIMIT_BYTES = 48 * 1024 * 1024    # <= v7x 64 MiB physical; raises v5e/v6e
_VMEM_BUDGET_BYTES = 40 * 1024 * 1024   # what T_CHUNK sizing may consume


def _round_up(x, m):
    return ((x + m - 1) // m) * m


def _pick_tile(n, pref):
    """Largest multiple of 128 that divides n and is <= pref (n % 128 == 0)."""
    if n <= pref:
        return n
    t = (pref // 128) * 128
    while t > 128 and n % t != 0:
        t -= 128
    return t


# ---------------------------------------------------------------------------
# Generic lane-dense matmul + bias kernel, tiled over M and N.
# Used for the fused all-timestep input GEMM and the final projection.
# ---------------------------------------------------------------------------
def _matmul_bias_kernel(a_ref, w_ref, b_ref, o_ref):
    acc = jnp.dot(a_ref[...], w_ref[...], preferred_element_type=jnp.float32)
    o_ref[...] = (acc + b_ref[...]).astype(o_ref.dtype)


def pallas_matmul_bias(a, w, bias, *, out_dtype=jnp.float32, tm=256, tn=512):
    """a: (M, K), w: (K, N), bias: (1, N) f32 -> (M, N) out_dtype.

    K and N must be multiples of 128 (callers pad); M is padded to a sublane /
    tile multiple internally and sliced back.
    """
    # TODO(synk): add a K grid axis + f32 accumulator scratch if K ever grows
    # past a few thousand (not needed for E_pad / H_pad sized contractions).
    M, K = a.shape
    K2, N = w.shape
    assert K == K2
    M8 = _round_up(max(M, 1), 8)
    TM = min(tm, M8)
    M_pad = _round_up(M8, TM)
    if M_pad != M:
        a = jnp.pad(a, ((0, M_pad - M), (0, 0)))
    TN = _pick_tile(N, tn)

    out = pl.pallas_call(
        _matmul_bias_kernel,
        grid=(M_pad // TM, N // TN),
        in_specs=[
            pl.BlockSpec((TM, K), lambda i, j: (i, 0)),
            pl.BlockSpec((K, TN), lambda i, j: (0, j)),
            pl.BlockSpec((1, TN), lambda i, j: (0, j)),
        ],
        out_specs=pl.BlockSpec((TM, TN), lambda i, j: (i, j)),
        out_shape=jax.ShapeDtypeStruct((M_pad, N), out_dtype),
        compiler_params=pltpu.CompilerParams(
            dimension_semantics=("parallel", "parallel"),
            vmem_limit_bytes=_VMEM_LIMIT_BYTES),
    )(a, w, bias)
    return out[:M]


# ---------------------------------------------------------------------------
# Serial LSTM recurrence kernel. Grid iterates over L-chunks ("arbitrary");
# h/c state lives in VMEM scratch and persists across grid steps.
# ---------------------------------------------------------------------------
def _lstm_recurrence_kernel(xg_ref, wh_ref, h0_ref, c0_ref,
                            hseq_ref, hN_ref, cN_ref,
                            h_scr, c_scr,
                            *, num_layers, t_chunk, num_chunks, seq_len,
                            h_pad, gate_w):
    chunk = pl.program_id(0)

    @pl.when(chunk == 0)
    def _init():
        h_scr[...] = h0_ref[...]
        c_scr[...] = c0_ref[...]

    def timestep(t):
        # Precomputed input contribution for all layers at this step (bf16 in
        # HBM -> f32 for gate math).
        xg_t = xg_ref[t].astype(jnp.float32)              # (B_pad, nl*G)
        for j in range(num_layers):                       # static layer loop
            gates = (jnp.dot(h_scr[j].astype(wh_ref.dtype), wh_ref[j],
                             preferred_element_type=jnp.float32)
                     + xg_t[:, j * gate_w:(j + 1) * gate_w])   # (B_pad, G)
            # Gate layout f|i|o|g: one sigmoid over 3*H_pad, one tanh over H_pad.
            sg = jax.nn.sigmoid(gates[:, :3 * h_pad])
            g = jnp.tanh(gates[:, 3 * h_pad:])
            f = sg[:, :h_pad]
            i = sg[:, h_pad:2 * h_pad]
            o = sg[:, 2 * h_pad:3 * h_pad]
            c_new = f * c_scr[j] + i * g
            h_new = o * jnp.tanh(c_new)
            c_scr[j] = c_new
            h_scr[j] = h_new
        hseq_ref[t] = h_scr[num_layers - 1].astype(hseq_ref.dtype)

    tail = seq_len - (num_chunks - 1) * t_chunk            # static
    if tail == t_chunk:
        # T_CHUNK divides L: no guard anywhere on the hot serial path.
        @pl.loop(0, t_chunk)
        def _(t):
            timestep(t)
    else:
        # Only the final chunk runs the short trip-count; earlier chunks pay
        # no per-step guard. (Unwritten tail rows of the last hseq block are
        # sliced off by the wrapper, never read.)
        @pl.when(chunk < num_chunks - 1)
        def _full():
            @pl.loop(0, t_chunk)
            def _(t):
                timestep(t)

        @pl.when(chunk == num_chunks - 1)
        def _last():
            @pl.loop(0, tail)
            def _(t):
                timestep(t)

    @pl.when(chunk == num_chunks - 1)
    def _finalize():
        hN_ref[...] = h_scr[...]
        cN_ref[...] = c_scr[...]


def _choose_t_chunk(L, B_pad, H_pad, num_layers, *, cap=256):
    """Budget-derived L-chunk so the streamed xg / hseq buffers fit VMEM."""
    G = 4 * H_pad
    fixed = (num_layers * H_pad * G * 2                    # Wh bf16, 1 buffer
             + 2 * num_layers * B_pad * H_pad * 4          # h0 + c0, 1 buffer
             + 2 * 2 * num_layers * B_pad * H_pad * 4      # hN + cN out buffers
             + 2 * num_layers * B_pad * H_pad * 4)         # h/c f32 scratch
    # Per-step streamed bytes: double-buffered xg input + hseq output (bf16).
    per_step = 2 * (B_pad * num_layers * G * 2) + 2 * (B_pad * H_pad * 2)
    budget = max(_VMEM_BUDGET_BYTES - fixed, per_step)
    return int(max(1, min(L, cap, budget // per_step)))


# ---------------------------------------------------------------------------
# One-time parameter preparation (fusion, padding, transposition, bf16 cast).
# ---------------------------------------------------------------------------
def prepare_params(params, num_layers, hidden_size, compute_dtype=jnp.bfloat16):
    H = hidden_size
    E = params["embed"].shape[1]
    V = params["wp"].shape[0]
    H_pad = _round_up(H, 128)
    E_pad = _round_up(E, 128)
    V_pad = _round_up(V, 128)
    G = 4 * H_pad
    f32 = jnp.float32

    # torch Linear weight (H, H+E): columns [:H] multiply h, [H:] multiply x.
    # Fused gate order f | i | o | g (sigmoid slab first, tanh slab last).
    gate_names = (("wf", "bf"), ("wi", "bi"), ("wo", "bo"), ("wc", "bc"))
    wh_f = jnp.zeros((num_layers, H_pad, G), f32)
    wx_f = jnp.zeros((num_layers, E_pad, G), f32)
    b_f = jnp.zeros((num_layers, 1, G), f32)
    for k, (wn, bn) in enumerate(gate_names):
        w = params[wn]                                       # (nl, H, H+E)
        wh_k = jnp.transpose(w[:, :, :H], (0, 2, 1))         # (nl, H, H)
        wx_k = jnp.transpose(w[:, :, H:], (0, 2, 1))         # (nl, E, H)
        wh_f = wh_f.at[:, :H, k * H_pad:k * H_pad + H].set(wh_k)
        wx_f = wx_f.at[:, :E, k * H_pad:k * H_pad + H].set(wx_k)
        b_f = b_f.at[:, 0, k * H_pad:k * H_pad + H].set(params[bn])

    # Fuse the per-layer input weights into one (E_pad, nl*G) GEMM operand.
    wx_big = jnp.transpose(wx_f, (1, 0, 2)).reshape(E_pad, num_layers * G)
    b_big = jnp.transpose(b_f, (1, 0, 2)).reshape(1, num_layers * G)

    wp_pad = jnp.zeros((H_pad, V_pad), f32).at[:H, :V].set(params["wp"].T)
    bp_pad = jnp.zeros((1, V_pad), f32).at[0, :V].set(params["bp"])

    return {
        "embed": params["embed"],                 # f32 gather table
        "wh": wh_f.astype(compute_dtype),         # (nl, H_pad, G)
        "wx_big": wx_big.astype(compute_dtype),   # (E_pad, nl*G)
        "b_big": b_big,                           # f32 (added to f32 acc)
        "wp": wp_pad.astype(compute_dtype),       # (H_pad, V_pad)
        "bp": bp_pad,                             # f32
        "dims": dict(H=H, E=E, V=V, H_pad=H_pad, E_pad=E_pad, V_pad=V_pad,
                     G=G, num_layers=num_layers),
    }


# ---------------------------------------------------------------------------
# Forward: embedding (XLA gather), fused input GEMM, serial recurrence,
# projection.
# ---------------------------------------------------------------------------
def generator_forward(tokens, prep, state=None):
    d = prep["dims"]
    nl, H, V = d["num_layers"], d["H"], d["V"]
    H_pad, E_pad, V_pad, G = d["H_pad"], d["E_pad"], d["V_pad"], d["G"]
    B, L = tokens.shape
    B_pad = _round_up(B, 8)
    bf16, f32 = jnp.bfloat16, jnp.float32

    T_CHUNK = _choose_t_chunk(L, B_pad, H_pad, nl)
    L_pad = _round_up(L, T_CHUNK)
    num_chunks = L_pad // T_CHUNK

    # --- embedding lookup (XLA gather; dropout p=0 -> identity) -------------
    x = jnp.take(prep["embed"], tokens, axis=0)              # (B, L, E)
    x_tm = jnp.transpose(x, (1, 0, 2))                       # (L, B, E)
    x_tm = jnp.pad(x_tm, ((0, L_pad - L), (0, B_pad - B),
                          (0, E_pad - x.shape[-1])))
    x_flat = x_tm.reshape(L_pad * B_pad, E_pad).astype(bf16)

    # --- input contribution, ALL timesteps, ALL layers: ONE GEMM ------------
    xg = pallas_matmul_bias(x_flat, prep["wx_big"], prep["b_big"],
                            out_dtype=bf16)                  # (L_pad*B_pad, nl*G)
    xg = xg.reshape(L_pad, B_pad, nl * G)

    # --- initial state -------------------------------------------------------
    if state is None:
        h0 = jnp.zeros((nl, B_pad, H_pad), f32)
        c0 = jnp.zeros((nl, B_pad, H_pad), f32)
    else:
        h_in, c_in = state
        h0 = jnp.zeros((nl, B_pad, H_pad), f32).at[:, :B, :H].set(h_in)
        c0 = jnp.zeros((nl, B_pad, H_pad), f32).at[:, :B, :H].set(c_in)

    # --- serial recurrence (L-chunked grid, state in VMEM scratch) ----------
    # TODO(synk): on v7x the layers are independent (each consumes x_t, not the
    # previous layer's output); a leading "parallel" layer axis could use the
    # second TensorCore, but needs a per-layer hseq output layout to avoid both
    # cores writing the same hseq blocks — left out for safety.
    kernel = functools.partial(
        _lstm_recurrence_kernel, num_layers=nl, t_chunk=T_CHUNK,
        num_chunks=num_chunks, seq_len=L, h_pad=H_pad, gate_w=G)

    invariant = dict(pipeline_mode=pl.Buffered(1))           # single-buffered
    hseq, hN, cN = pl.pallas_call(
        kernel,
        grid=(num_chunks,),
        in_specs=[
            pl.BlockSpec((T_CHUNK, B_pad, nl * G), lambda i: (i, 0, 0)),
            pl.BlockSpec((nl, H_pad, G), lambda i: (0, 0, 0), **invariant),
            pl.BlockSpec((nl, B_pad, H_pad), lambda i: (0, 0, 0), **invariant),
            pl.BlockSpec((nl, B_pad, H_pad), lambda i: (0, 0, 0), **invariant),
        ],
        out_specs=(
            pl.BlockSpec((T_CHUNK, B_pad, H_pad), lambda i: (i, 0, 0)),
            pl.BlockSpec((nl, B_pad, H_pad), lambda i: (0, 0, 0)),
            pl.BlockSpec((nl, B_pad, H_pad), lambda i: (0, 0, 0)),
        ),
        out_shape=(
            jax.ShapeDtypeStruct((L_pad, B_pad, H_pad), bf16),
            jax.ShapeDtypeStruct((nl, B_pad, H_pad), f32),
            jax.ShapeDtypeStruct((nl, B_pad, H_pad), f32),
        ),
        scratch_shapes=[
            pltpu.VMEM((nl, B_pad, H_pad), f32),
            pltpu.VMEM((nl, B_pad, H_pad), f32),
        ],
        compiler_params=pltpu.CompilerParams(
            dimension_semantics=("arbitrary",),
            vmem_limit_bytes=_VMEM_LIMIT_BYTES),
    )(xg, prep["wh"], h0, c0)

    # --- projection: transpose BEFORE the GEMM (only real B*L rows projected,
    #     no HBM round-trip transpose of the B*L*V logits afterwards) ---------
    h_bl = jnp.transpose(hseq[:L, :B, :], (1, 0, 2)).reshape(B * L, H_pad)
    logits_pad = pallas_matmul_bias(h_bl, prep["wp"], prep["bp"],
                                    out_dtype=f32)            # (B*L, V_pad)
    logits = logits_pad[:, :V]                                # (B*L, V), B-major

    return logits, (hN[:, :B, :H], cN[:, :B, :H])


# ---------------------------------------------------------------------------
# Pure-JAX f32 reference matching the PyTorch module exactly.
# ---------------------------------------------------------------------------
def reference_forward(tokens, params, num_layers, hidden_size):
    B, L = tokens.shape
    H = hidden_size
    x = jnp.take(params["embed"], tokens, axis=0)
    h = jnp.zeros((num_layers, B, H), jnp.float32)
    c = jnp.zeros((num_layers, B, H), jnp.float32)
    outs = []
    for t in range(L):
        x_t = x[:, t, :]
        h_new, c_new = [], []
        for j in range(num_layers):
            z = jnp.concatenate([h[j], x_t], axis=-1)
            ft = jax.nn.sigmoid(z @ params["wf"][j].T + params["bf"][j])
            it = jax.nn.sigmoid(z @ params["wi"][j].T + params["bi"][j])
            gt = jnp.tanh(z @ params["wc"][j].T + params["bc"][j])
            cj = ft * c[j] + it * gt
            ot = jax.nn.sigmoid(z @ params["wo"][j].T + params["bo"][j])
            h_new.append(ot * jnp.tanh(cj))
            c_new.append(cj)
        h = jnp.stack(h_new, 0)
        c = jnp.stack(c_new, 0)
        outs.append(h[-1] @ params["wp"].T + params["bp"])
    out = jnp.stack(outs, axis=1)                  # (B, L, V)
    return out.reshape(B * L, -1), (h, c)


def init_params(key, ntoken, embed_dim, hidden_size, num_layers):
    H, E = hidden_size, embed_dim
    bound = 1.0 / math.sqrt(H)
    keys = jax.random.split(key, 12)
    u = lambda k, shape: jax.random.uniform(k, shape, jnp.float32, -bound, bound)
    return {
        "embed": jax.random.normal(keys[0], (ntoken, E), jnp.float32) * 0.1,
        "wf": u(keys[1], (num_layers, H, H + E)),
        "wi": u(keys[2], (num_layers, H, H + E)),
        "wc": u(keys[3], (num_layers, H, H + E)),
        "wo": u(keys[4], (num_layers, H, H + E)),
        "bf": u(keys[5], (num_layers, H)),
        "bi": u(keys[6], (num_layers, H)),
        "bc": u(keys[7], (num_layers, H)),
        "bo": u(keys[8], (num_layers, H)),
        "wp": u(keys[9], (ntoken, H)),
        "bp": u(keys[10], (ntoken,)),
    }


if __name__ == "__main__":
    B, L = 2, 8
    ntoken, embed_dim, hidden_size, num_layers = 64, 16, 32, 2

    key = jax.random.PRNGKey(0)
    kp, kt = jax.random.split(key)
    params = init_params(kp, ntoken, embed_dim, hidden_size, num_layers)
    tokens = jax.random.randint(kt, (B, L), 0, ntoken, dtype=jnp.int32)

    prep = prepare_params(params, num_layers, hidden_size)   # one-time prep
    fwd = jax.jit(lambda toks: generator_forward(toks, prep))

    logits, (h_fin, c_fin) = fwd(tokens)
    jax.block_until_ready((logits, h_fin, c_fin))

    # Reference uses the same bf16-quantized weights as the kernel, so the
    # comparison isolates activation quantization / accumulation order.
    params_q = jax.tree_util.tree_map(
        lambda v: v.astype(jnp.bfloat16).astype(jnp.float32), params)
    ref_logits, (ref_h, ref_c) = reference_forward(tokens, params_q,
                                                   num_layers, hidden_size)

    assert logits.shape == (B * L, ntoken)
    assert h_fin.shape == (num_layers, B, hidden_size)
    assert c_fin.shape == (num_layers, B, hidden_size)
    assert jnp.allclose(logits, ref_logits, atol=2e-2, rtol=2e-2)
    assert jnp.allclose(h_fin, ref_h, atol=2e-2, rtol=2e-2)
    assert jnp.allclose(c_fin, ref_c, atol=2e-2, rtol=2e-2)

    print("KERNEL_OK")
</pallas_src>

<mosaic_0001>
module attributes {stable_mosaic.version = 11 : i64} {
  func.func @_matmul_bias_kernel(%arg0: i32, %arg1: i32, %arg2: memref<16x128xbf16, #tpu.memory_space<vmem>>, %arg3: memref<128x128xbf16, #tpu.memory_space<vmem>>, %arg4: memref<1x128xf32, #tpu.memory_space<vmem>>, %arg5: memref<16x128xf32, #tpu.memory_space<vmem>>) attributes {dimension_semantics = [#tpu.dimension_semantics<parallel>, #tpu.dimension_semantics<parallel>], iteration_bounds = array<i64: 1, 1>, scalar_prefetch = 0 : i64, scratch_operands = 0 : i64, tpu.core_type = #tpu.core_type<tc>, window_params = [{transform_indices = @transform_0, window_bounds = array<i64: 16, 128>}, {transform_indices = @transform_1, window_bounds = array<i64: 128, 128>}, {transform_indices = @transform_2, window_bounds = array<i64: 1, 128>}, {transform_indices = @transform_3, window_bounds = array<i64: 16, 128>}]} {
    %c0 = arith.constant 0 : index
    %c0_0 = arith.constant 0 : index
    %0 = vector.load %arg2[%c0, %c0_0] : memref<16x128xbf16, #tpu.memory_space<vmem>>, vector<16x128xbf16>
    %c0_1 = arith.constant 0 : index
    %c0_2 = arith.constant 0 : index
    %1 = vector.load %arg3[%c0_1, %c0_2] : memref<128x128xbf16, #tpu.memory_space<vmem>>, vector<128x128xbf16>
    %cst = arith.constant dense<0.000000e+00> : vector<16x128xf32>
    %2 = tpu.matmul %0, %1, %cst {dimension_numbers = #tpu.dot_dimension_numbers<[1], [0], [0], [1], [0, 0, 1, 1], [], []>} : vector<16x128xbf16>, vector<128x128xbf16>, vector<16x128xf32> -> vector<16x128xf32>
    %c0_3 = arith.constant 0 : index
    %c0_4 = arith.constant 0 : index
    %3 = vector.load %arg4[%c0_3, %c0_4] : memref<1x128xf32, #tpu.memory_space<vmem>>, vector<1x128xf32>
    %4 = vector.broadcast %3 : vector<1x128xf32> to vector<16x128xf32>
    %5 = arith.addf %2, %4 : vector<16x128xf32>
    %c0_5 = arith.constant 0 : index
    %c0_6 = arith.constant 0 : index
    %6 = vector.load %arg5[%c0_5, %c0_6] : memref<16x128xf32, #tpu.memory_space<vmem>>, vector<16x128xf32>
    tpu.vector_store %arg5[%c0_5, %c0_6], %5 {strides = array<i32>} : memref<16x128xf32, #tpu.memory_space<vmem>>, vector<16x128xf32>,
    return
  }
  func.func @transform_0(%arg0: i32, %arg1: i32) -> (i32, i32) {
    %c0_i32 = arith.constant 0 : i32
    %c0_i32_0 = arith.constant 0 : i32
    return %arg0, %c0_i32 : i32, i32
  }
  func.func @transform_1(%arg0: i32, %arg1: i32) -> (i32, i32) {
    %c0_i32 = arith.constant 0 : i32
    %c0_i32_0 = arith.constant 0 : i32
    return %c0_i32, %arg1 : i32, i32
  }
  func.func @transform_2(%arg0: i32, %arg1: i32) -> (i32, i32) {
    %c0_i32 = arith.constant 0 : i32
    %c0_i32_0 = arith.constant 0 : i32
    return %c0_i32, %arg1 : i32, i32
  }
  func.func @transform_3(%arg0: i32, %arg1: i32) -> (i32, i32) {
    %c0_i32 = arith.constant 0 : i32
    return %arg0, %arg1 : i32, i32
  }
}

module attributes {stable_mosaic.version = 11 : i64} {
  func.func @_matmul_bias_kernel(%arg0: i32, %arg1: i32, %arg2: memref<64x128xbf16, #tpu.memory_space<vmem>>, %arg3: memref<128x512xbf16, #tpu.memory_space<vmem>>, %arg4: memref<1x512xf32, #tpu.memory_space<vmem>>, %arg5: memref<64x512xbf16, #tpu.memory_space<vmem>>) attributes {dimension_semantics = [#tpu.dimension_semantics<parallel>, #tpu.dimension_semantics<parallel>], iteration_bounds = array<i64: 1, 2>, scalar_prefetch = 0 : i64, scratch_operands = 0 : i64, tpu.core_type = #tpu.core_type<tc>, window_params = [{transform_indices = @transform_0, window_bounds = array<i64: 64, 128>}, {transform_indices = @transform_1, window_bounds = array<i64: 128, 512>}, {transform_indices = @transform_2, window_bounds = array<i64: 1, 512>}, {transform_indices = @transform_3, window_bounds = array<i64: 64, 512>}]} {
    %c0 = arith.constant 0 : index
    %c0_0 = arith.constant 0 : index
    %0 = vector.load %arg2[%c0, %c0_0] : memref<64x128xbf16, #tpu.memory_space<vmem>>, vector<64x128xbf16>
    %c0_1 = arith.constant 0 : index
    %c0_2 = arith.constant 0 : index
    %1 = vector.load %arg3[%c0_1, %c0_2] : memref<128x512xbf16, #tpu.memory_space<vmem>>, vector<128x512xbf16>
    %cst = arith.constant dense<0.000000e+00> : vector<64x512xf32>
    %2 = tpu.matmul %0, %1, %cst {dimension_numbers = #tpu.dot_dimension_numbers<[1], [0], [0], [1], [0, 0, 1, 1], [], []>} : vector<64x128xbf16>, vector<128x512xbf16>, vector<64x512xf32> -> vector<64x512xf32>
    %c0_3 = arith.constant 0 : index
    %c0_4 = arith.constant 0 : index
    %3 = vector.load %arg4[%c0_3, %c0_4] : memref<1x512xf32, #tpu.memory_space<vmem>>, vector<1x512xf32>
    %4 = vector.broadcast %3 : vector<1x512xf32> to vector<64x512xf32>
    %5 = arith.addf %2, %4 : vector<64x512xf32>
    %6 = arith.truncf %5 : vector<64x512xf32> to vector<64x512xbf16>
    %c0_5 = arith.constant 0 : index
    %c0_6 = arith.constant 0 : index
    %7 = vector.load %arg5[%c0_5, %c0_6] : memref<64x512xbf16, #tpu.memory_space<vmem>>, vector<64x512xbf16>
    tpu.vector_store %arg5[%c0_5, %c0_6], %6 {strides = array<i32>} : memref<64x512xbf16, #tpu.memory_space<vmem>>, vector<64x512xbf16>,
    return
  }
  func.func @transform_0(%arg0: i32, %arg1: i32) -> (i32, i32) {
    %c0_i32 = arith.constant 0 : i32
    %c0_i32_0 = arith.constant 0 : i32
    return %arg0, %c0_i32 : i32, i32
  }
  func.func @transform_1(%arg0: i32, %arg1: i32) -> (i32, i32) {
    %c0_i32 = arith.constant 0 : i32
    %c0_i32_0 = arith.constant 0 : i32
    return %c0_i32, %arg1 : i32, i32
  }
  func.func @transform_2(%arg0: i32, %arg1: i32) -> (i32, i32) {
    %c0_i32 = arith.constant 0 : i32
    %c0_i32_0 = arith.constant 0 : i32
    return %c0_i32, %arg1 : i32, i32
  }
  func.func @transform_3(%arg0: i32, %arg1: i32) -> (i32, i32) {
    %c0_i32 = arith.constant 0 : i32
    return %arg0, %arg1 : i32, i32
  }
}

module attributes {stable_mosaic.version = 11 : i64} {
  func.func @_lstm_recurrence_kernel(%arg0: i32, %arg1: memref<8x8x1024xbf16, #tpu.memory_space<vmem>>, %arg2: memref<2x128x512xbf16, #tpu.memory_space<vmem>>, %arg3: memref<2x8x128xf32, #tpu.memory_space<vmem>>, %arg4: memref<2x8x128xf32, #tpu.memory_space<vmem>>, %arg5: memref<8x8x128xbf16, #tpu.memory_space<vmem>>, %arg6: memref<2x8x128xf32, #tpu.memory_space<vmem>>, %arg7: memref<2x8x128xf32, #tpu.memory_space<vmem>>, %arg8: memref<2x8x128xf32, #tpu.memory_space<vmem>>, %arg9: memref<2x8x128xf32, #tpu.memory_space<vmem>>) attributes {dimension_semantics = [#tpu.dimension_semantics<arbitrary>], iteration_bounds = array<i64: 1>, scalar_prefetch = 0 : i64, scratch_operands = 2 : i64, tpu.core_type = #tpu.core_type<tc>, window_params = [{transform_indices = @transform_0, window_bounds = array<i64: 8, 8, 1024>}, {pipeline_mode = #tpu.pipeline_mode<synchronous>, transform_indices = @transform_1, window_bounds = array<i64: 2, 128, 512>}, {pipeline_mode = #tpu.pipeline_mode<synchronous>, transform_indices = @transform_2, window_bounds = array<i64: 2, 8, 128>}, {pipeline_mode = #tpu.pipeline_mode<synchronous>, transform_indices = @transform_3, window_bounds = array<i64: 2, 8, 128>}, {transform_indices = @transform_4, window_bounds = array<i64: 8, 8, 128>}, {pipeline_mode = #tpu.pipeline_mode<synchronous>, transform_indices = @transform_5, window_bounds = array<i64: 2, 8, 128>}, {pipeline_mode = #tpu.pipeline_mode<synchronous>, transform_indices = @transform_6, window_bounds = array<i64: 2, 8, 128>}]} {
    %c0_i32 = arith.constant 0 : i32
    %0 = arith.cmpi eq, %arg0, %c0_i32 : i32
    %1 = arith.extui %0 : i1 to i32
    %c0_i32_0 = arith.constant 0 : i32
    %2 = arith.cmpi ne, %1, %c0_i32_0 : i32
    scf.if %2 {
      %c0 = arith.constant 0 : index
      %c0_5 = arith.constant 0 : index
      %c0_6 = arith.constant 0 : index
      %7 = vector.load %arg3[%c0, %c0_5, %c0_6] : memref<2x8x128xf32, #tpu.memory_space<vmem>>, vector<2x8x128xf32>
      %c0_7 = arith.constant 0 : index
      %c0_8 = arith.constant 0 : index
      %c0_9 = arith.constant 0 : index
      %8 = vector.load %arg8[%c0_7, %c0_8, %c0_9] : memref<2x8x128xf32, #tpu.memory_space<vmem>>, vector<2x8x128xf32>
      tpu.vector_store %arg8[%c0_7, %c0_8, %c0_9], %7 {strides = array<i32>} : memref<2x8x128xf32, #tpu.memory_space<vmem>>, vector<2x8x128xf32>,
      %c0_10 = arith.constant 0 : index
      %c0_11 = arith.constant 0 : index
      %c0_12 = arith.constant 0 : index
      %9 = vector.load %arg4[%c0_10, %c0_11, %c0_12] : memref<2x8x128xf32, #tpu.memory_space<vmem>>, vector<2x8x128xf32>
      %c0_13 = arith.constant 0 : index
      %c0_14 = arith.constant 0 : index
      %c0_15 = arith.constant 0 : index
      %10 = vector.load %arg9[%c0_13, %c0_14, %c0_15] : memref<2x8x128xf32, #tpu.memory_space<vmem>>, vector<2x8x128xf32>
      tpu.vector_store %arg9[%c0_13, %c0_14, %c0_15], %9 {strides = array<i32>} : memref<2x8x128xf32, #tpu.memory_space<vmem>>, vector<2x8x128xf32>,
    } else {
    }
    %c0_i32_1 = arith.constant 0 : i32
    %c8_i32 = arith.constant 8 : i32
    %3 = arith.addi %c0_i32_1, %c8_i32 : i32
    %c1_i32 = arith.constant 1 : i32
    scf.for %arg10 = %c0_i32_1 to %3 step %c1_i32  : i32 {
      %c1_i32_5 = arith.constant 1 : i32
      %7 = arith.muli %arg10, %c1_i32_5 : i32
      %c0_i32_6 = arith.constant 0 : i32
      %8 = arith.addi %c0_i32_6, %7 : i32
      %9 = arith.index_cast %8 : i32 to index
      %c0 = arith.constant 0 : index
      %c0_7 = arith.constant 0 : index
      %10 = vector.load %arg1[%9, %c0, %c0_7] : memref<8x8x1024xbf16, #tpu.memory_space<vmem>>, vector<1x8x1024xbf16>
      %11 = vector.shape_cast %10 : vector<1x8x1024xbf16> to vector<8x1024xbf16>
      %12 = arith.extf %11 : vector<8x1024xbf16> to vector<8x1024xf32>
      %c0_8 = arith.constant 0 : index
      %c0_9 = arith.constant 0 : index
      %c0_10 = arith.constant 0 : index
      %13 = vector.load %arg8[%c0_8, %c0_9, %c0_10] : memref<2x8x128xf32, #tpu.memory_space<vmem>>, vector<1x8x128xf32>
      %14 = vector.shape_cast %13 : vector<1x8x128xf32> to vector<8x128xf32>
      %15 = arith.truncf %14 : vector<8x128xf32> to vector<8x128xbf16>
      %c0_11 = arith.constant 0 : index
      %c0_12 = arith.constant 0 : index
      %c0_13 = arith.constant 0 : index
      %16 = vector.load %arg2[%c0_11, %c0_12, %c0_13] : memref<2x128x512xbf16, #tpu.memory_space<vmem>>, vector<1x128x512xbf16>
      %17 = vector.shape_cast %16 : vector<1x128x512xbf16> to vector<128x512xbf16>
      %cst = arith.constant dense<0.000000e+00> : vector<8x512xf32>
      %18 = tpu.matmul %15, %17, %cst {dimension_numbers = #tpu.dot_dimension_numbers<[1], [0], [0], [1], [0, 0, 1, 1], [], []>} : vector<8x128xbf16>, vector<128x512xbf16>, vector<8x512xf32> -> vector<8x512xf32>
      %19 = vector.extract_strided_slice %12 {offsets = [0, 0], sizes = [8, 512], strides = [1, 1]} : vector<8x1024xf32> to vector<8x512xf32>
      %20 = arith.addf %18, %19 : vector<8x512xf32>
      %21 = vector.extract_strided_slice %20 {offsets = [0, 0], sizes = [8, 384], strides = [1, 1]} : vector<8x512xf32> to vector<8x384xf32>
      %22 = arith.negf %21 : vector<8x384xf32>
      %23 = math.exp %22 : vector<8x384xf32>
      %cst_14 = arith.constant 1.000000e+00 : f32
      %24 = vector.broadcast %cst_14 : f32 to vector<8x384xf32>
      %25 = arith.addf %24, %23 : vector<8x384xf32>
      %26 = arith.divf %24, %25 : vector<8x384xf32>
      %27 = vector.extract_strided_slice %20 {offsets = [0, 384], sizes = [8, 128], strides = [1, 1]} : vector<8x512xf32> to vector<8x128xf32>
      %28 = math.tanh %27 : vector<8x128xf32>
      %29 = vector.extract_strided_slice %26 {offsets = [0, 0], sizes = [8, 128], strides = [1, 1]} : vector<8x384xf32> to vector<8x128xf32>
      %30 = vector.extract_strided_slice %26 {offsets = [0, 128], sizes = [8, 128], strides = [1, 1]} : vector<8x384xf32> to vector<8x128xf32>
      %31 = vector.extract_strided_slice %26 {offsets = [0, 256], sizes = [8, 128], strides = [1, 1]} : vector<8x384xf32> to vector<8x128xf32>
      %c0_15 = arith.constant 0 : index
      %c0_16 = arith.constant 0 : index
      %c0_17 = arith.constant 0 : index
      %32 = vector.load %arg9[%c0_15, %c0_16, %c0_17] : memref<2x8x128xf32, #tpu.memory_space<vmem>>, vector<1x8x128xf32>
      %33 = vector.shape_cast %32 : vector<1x8x128xf32> to vector<8x128xf32>
      %34 = arith.mulf %29, %33 : vector<8x128xf32>
      %35 = arith.mulf %30, %28 : vector<8x128xf32>
      %36 = arith.addf %34, %35 : vector<8x128xf32>
      %37 = math.tanh %36 : vector<8x128xf32>
      %38 = arith.mulf %31, %37 : vector<8x128xf32>
      %c0_18 = arith.constant 0 : index
      %c0_19 = arith.constant 0 : index
      %c0_20 = arith.constant 0 : index
      %39 = vector.load %arg9[%c0_18, %c0_19, %c0_20] : memref<2x8x128xf32, #tpu.memory_space<vmem>>, vector<1x8x128xf32>
      %40 = vector.shape_cast %39 : vector<1x8x128xf32> to vector<8x128xf32>
      %41 = vector.shape_cast %36 : vector<8x128xf32> to vector<1x8x128xf32>
      tpu.vector_store %arg9[%c0_18, %c0_19, %c0_20], %41 {strides = array<i32>} : memref<2x8x128xf32, #tpu.memory_space<vmem>>, vector<1x8x128xf32>,
      %c0_21 = arith.constant 0 : index
      %c0_22 = arith.constant 0 : index
      %c0_23 = arith.constant 0 : index
      %42 = vector.load %arg8[%c0_21, %c0_22, %c0_23] : memref<2x8x128xf32, #tpu.memory_space<vmem>>, vector<1x8x128xf32>
      %43 = vector.shape_cast %42 : vector<1x8x128xf32> to vector<8x128xf32>
      %44 = vector.shape_cast %38 : vector<8x128xf32> to vector<1x8x128xf32>
      tpu.vector_store %arg8[%c0_21, %c0_22, %c0_23], %44 {strides = array<i32>} : memref<2x8x128xf32, #tpu.memory_space<vmem>>, vector<1x8x128xf32>,
      %c1 = arith.constant 1 : index
      %c0_24 = arith.constant 0 : index
      %c0_25 = arith.constant 0 : index
      %45 = vector.load %arg8[%c1, %c0_24, %c0_25] : memref<2x8x128xf32, #tpu.memory_space<vmem>>, vector<1x8x128xf32>
      %46 = vector.shape_cast %45 : vector<1x8x128xf32> to vector<8x128xf32>
      %47 = arith.truncf %46 : vector<8x128xf32> to vector<8x128xbf16>
      %c1_26 = arith.constant 1 : index
      %c0_27 = arith.constant 0 : index
      %c0_28 = arith.constant 0 : index
      %48 = vector.load %arg2[%c1_26, %c0_27, %c0_28] : memref<2x128x512xbf16, #tpu.memory_space<vmem>>, vector<1x128x512xbf16>
      %49 = vector.shape_cast %48 : vector<1x128x512xbf16> to vector<128x512xbf16>
      %cst_29 = arith.constant dense<0.000000e+00> : vector<8x512xf32>
      %50 = tpu.matmul %47, %49, %cst_29 {dimension_numbers = #tpu.dot_dimension_numbers<[1], [0], [0], [1], [0, 0, 1, 1], [], []>} : vector<8x128xbf16>, vector<128x512xbf16>, vector<8x512xf32> -> vector<8x512xf32>
      %51 = vector.extract_strided_slice %12 {offsets = [0, 512], sizes = [8, 512], strides = [1, 1]} : vector<8x1024xf32> to vector<8x512xf32>
      %52 = arith.addf %50, %51 : vector<8x512xf32>
      %53 = vector.extract_strided_slice %52 {offsets = [0, 0], sizes = [8, 384], strides = [1, 1]} : vector<8x512xf32> to vector<8x384xf32>
      %54 = arith.negf %53 : vector<8x384xf32>
      %55 = math.exp %54 : vector<8x384xf32>
      %cst_30 = arith.constant 1.000000e+00 : f32
      %56 = vector.broadcast %cst_30 : f32 to vector<8x384xf32>
      %57 = arith.addf %56, %55 : vector<8x384xf32>
      %58 = arith.divf %56, %57 : vector<8x384xf32>
      %59 = vector.extract_strided_slice %52 {offsets = [0, 384], sizes = [8, 128], strides = [1, 1]} : vector<8x512xf32> to vector<8x128xf32>
      %60 = math.tanh %59 : vector<8x128xf32>
      %61 = vector.extract_strided_slice %58 {offsets = [0, 0], sizes = [8, 128], strides = [1, 1]} : vector<8x384xf32> to vector<8x128xf32>
      %62 = vector.extract_strided_slice %58 {offsets = [0, 128], sizes = [8, 128], strides = [1, 1]} : vector<8x384xf32> to vector<8x128xf32>
      %63 = vector.extract_strided_slice %58 {offsets = [0, 256], sizes = [8, 128], strides = [1, 1]} : vector<8x384xf32> to vector<8x128xf32>
      %c1_31 = arith.constant 1 : index
      %c0_32 = arith.constant 0 : index
      %c0_33 = arith.constant 0 : index
      %64 = vector.load %arg9[%c1_31, %c0_32, %c0_33] : memref<2x8x128xf32, #tpu.memory_space<vmem>>, vector<1x8x128xf32>
      %65 = vector.shape_cast %64 : vector<1x8x128xf32> to vector<8x128xf32>
      %66 = arith.mulf %61, %65 : vector<8x128xf32>
      %67 = arith.mulf %62, %60 : vector<8x128xf32>
      %68 = arith.addf %66, %67 : vector<8x128xf32>
      %69 = math.tanh %68 : vector<8x128xf32>
      %70 = arith.mulf %63, %69 : vector<8x128xf32>
      %c1_34 = arith.constant 1 : index
      %c0_35 = arith.constant 0 : index
      %c0_36 = arith.constant 0 : index
      %71 = vector.load %arg9[%c1_34, %c0_35, %c0_36] : memref<2x8x128xf32, #tpu.memory_space<vmem>>, vector<1x8x128xf32>
      %72 = vector.shape_cast %71 : vector<1x8x128xf32> to vector<8x128xf32>
      %73 = vector.shape_cast %68 : vector<8x128xf32> to vector<1x8x128xf32>
      tpu.vector_store %arg9[%c1_34, %c0_35, %c0_36], %73 {strides = array<i32>} : memref<2x8x128xf32, #tpu.memory_space<vmem>>, vector<1x8x128xf32>,
      %c1_37 = arith.constant 1 : index
      %c0_38 = arith.constant 0 : index
      %c0_39 = arith.constant 0 : index
      %74 = vector.load %arg8[%c1_37, %c0_38, %c0_39] : memref<2x8x128xf32, #tpu.memory_space<vmem>>, vector<1x8x128xf32>
      %75 = vector.shape_cast %74 : vector<1x8x128xf32> to vector<8x128xf32>
      %76 = vector.shape_cast %70 : vector<8x128xf32> to vector<1x8x128xf32>
      tpu.vector_store %arg8[%c1_37, %c0_38, %c0_39], %76 {strides = array<i32>} : memref<2x8x128xf32, #tpu.memory_space<vmem>>, vector<1x8x128xf32>,
      %c1_40 = arith.constant 1 : index
      %c0_41 = arith.constant 0 : index
      %c0_42 = arith.constant 0 : index
      %77 = vector.load %arg8[%c1_40, %c0_41, %c0_42] : memref<2x8x128xf32, #tpu.memory_space<vmem>>, vector<1x8x128xf32>
      %78 = vector.shape_cast %77 : vector<1x8x128xf32> to vector<8x128xf32>
      %79 = arith.truncf %78 : vector<8x128xf32> to vector<8x128xbf16>
      %80 = arith.index_cast %8 : i32 to index
      %c0_43 = arith.constant 0 : index
      %c0_44 = arith.constant 0 : index
      %81 = vector.load %arg5[%80, %c0_43, %c0_44] : memref<8x8x128xbf16, #tpu.memory_space<vmem>>, vector<1x8x128xbf16>
      %82 = vector.shape_cast %81 : vector<1x8x128xbf16> to vector<8x128xbf16>
      %83 = vector.shape_cast %79 : vector<8x128xbf16> to vector<1x8x128xbf16>
      tpu.vector_store %arg5[%80, %c0_43, %c0_44], %83 {strides = array<i32>} : memref<8x8x128xbf16, #tpu.memory_space<vmem>>, vector<1x8x128xbf16>,
    }
    %c8_i32_2 = arith.constant 8 : i32
    %c0_i32_3 = arith.constant 0 : i32
    %4 = arith.cmpi eq, %arg0, %c0_i32_3 : i32
    %5 = arith.extui %4 : i1 to i32
    %c0_i32_4 = arith.constant 0 : i32
    %6 = arith.cmpi ne, %5, %c0_i32_4 : i32
    scf.if %6 {
      %c0 = arith.constant 0 : index
      %c0_5 = arith.constant 0 : index
      %c0_6 = arith.constant 0 : index
      %7 = vector.load %arg8[%c0, %c0_5, %c0_6] : memref<2x8x128xf32, #tpu.memory_space<vmem>>, vector<2x8x128xf32>
      %c0_7 = arith.constant 0 : index
      %c0_8 = arith.constant 0 : index
      %c0_9 = arith.constant 0 : index
      %8 = vector.load %arg6[%c0_7, %c0_8, %c0_9] : memref<2x8x128xf32, #tpu.memory_space<vmem>>, vector<2x8x128xf32>
      tpu.vector_store %arg6[%c0_7, %c0_8, %c0_9], %7 {strides = array<i32>} : memref<2x8x128xf32, #tpu.memory_space<vmem>>, vector<2x8x128xf32>,
      %c0_10 = arith.constant 0 : index
      %c0_11 = arith.constant 0 : index
      %c0_12 = arith.constant 0 : index
      %9 = vector.load %arg9[%c0_10, %c0_11, %c0_12] : memref<2x8x128xf32, #tpu.memory_space<vmem>>, vector<2x8x128xf32>
      %c0_13 = arith.constant 0 : index
      %c0_14 = arith.constant 0 : index
      %c0_15 = arith.constant 0 : index
      %10 = vector.load %arg7[%c0_13, %c0_14, %c0_15] : memref<2x8x128xf32, #tpu.memory_space<vmem>>, vector<2x8x128xf32>
      tpu.vector_store %arg7[%c0_13, %c0_14, %c0_15], %9 {strides = array<i32>} : memref<2x8x128xf32, #tpu.memory_space<vmem>>, vector<2x8x128xf32>,
    } else {
    }
    return
  }
  func.func @transform_0(%arg0: i32) -> (i32, i32, i32) {
    %c0_i32 = arith.constant 0 : i32
    %c0_i32_0 = arith.constant 0 : i32
    %c0_i32_1 = arith.constant 0 : i32
    return %arg0, %c0_i32, %c0_i32_0 : i32, i32, i32
  }
  func.func @transform_1(%arg0: i32) -> (i32, i32, i32) {
    %c0_i32 = arith.constant 0 : i32
    %c0_i32_0 = arith.constant 0 : i32
    %c0_i32_1 = arith.constant 0 : i32
    %c0_i32_2 = arith.constant 0 : i32
    return %c0_i32, %c0_i32_0, %c0_i32_1 : i32, i32, i32
  }
  func.func @transform_2(%arg0: i32) -> (i32, i32, i32) {
    %c0_i32 = arith.constant 0 : i32
    %c0_i32_0 = arith.constant 0 : i32
    %c0_i32_1 = arith.constant 0 : i32
    %c0_i32_2 = arith.constant 0 : i32
    return %c0_i32, %c0_i32_0, %c0_i32_1 : i32, i32, i32
  }
  func.func @transform_3(%arg0: i32) -> (i32, i32, i32) {
    %c0_i32 = arith.constant 0 : i32
    %c0_i32_0 = arith.constant 0 : i32
    %c0_i32_1 = arith.constant 0 : i32
    %c0_i32_2 = arith.constant 0 : i32
    return %c0_i32, %c0_i32_0, %c0_i32_1 : i32, i32, i32
  }
  func.func @transform_4(%arg0: i32) -> (i32, i32, i32) {
    %c0_i32 = arith.constant 0 : i32
    %c0_i32_0 = arith.constant 0 : i32
    %c0_i32_1 = arith.constant 0 : i32
    return %arg0, %c0_i32, %c0_i32_0 : i32, i32, i32
  }
  func.func @transform_5(%arg0: i32) -> (i32, i32, i32) {
    %c0_i32 = arith.constant 0 : i32
    %c0_i32_0 = arith.constant 0 : i32
    %c0_i32_1 = arith.constant 0 : i32
    %c0_i32_2 = arith.constant 0 : i32
    return %c0_i32, %c0_i32_0, %c0_i32_1 : i32, i32, i32
  }
  func.func @transform_6(%arg0: i32) -> (i32, i32, i32) {
    %c0_i32 = arith.constant 0 : i32
    %c0_i32_0 = arith.constant 0 : i32
    %c0_i32_1 = arith.constant 0 : i32
    %c0_i32_2 = arith.constant 0 : i32
    return %c0_i32, %c0_i32_0, %c0_i32_1 : i32, i32, i32
  }
}

</mosaic_0001>

<llo_original>
// kernel: _lambda_.5
$region0: #{_lambda_.5}
  #allocation0 [shape = 'u32[]', space=smem, size = 0x4, offset = 0x4, fixed_abs, tag = 'smem constant byte address 0x4 - core index']
  #allocation1 [shape = 'u32[144,128]{1,0:T(1,128)}', space=vmem, size = 0x12000, scoped, tag = 'internal scratch']
  %s0 = inlined_call_operand.vmem [shape: bf16[16,128], index: 0, kind: input, shape index: {}]
  %s1 = inlined_call_operand.vmem [shape: bf16[128,128], index: 1, kind: input, shape index: {}]
  %s2 = inlined_call_operand.vmem [shape: f32[1,128], index: 2, kind: input, shape index: {}]
  %s3 = inlined_call_operand.hbm [shape: f32[16,128], index: 3, kind: output, shape index: {}]
  %s4 = sld [smem:[#allocation0]]
  $region22: #{_lambda_.5} parent=0
    _
  %s6 = ssub.s32 1, %s4
  %s7 = scalar_select 0, %s6, %s4
  $region1: #{_lambda_.5} parent=0
    #allocation2 [shape = 'u8[8192]{0}', space=vmem, size = 0x2000, scoped, tag = 'output window, operand 0, single buffered']
    #allocation3 [shape = 's32[1]{0}', space=sflag, size = 0x4, scoped, tag = 'scoped memory for _lambda_.5']
    %8 = vsyncpa [#allocation3], 0
    // Predicated region
    $region2: #{_lambda_.5} parent=1 // pred_check
      _
    $region3: #{_lambda_.5} parent=1 // pred_check_branch
      %10 = sbr.rel (0) target = $region5
    $region4: #{_lambda_.5} parent=1 // pred_region
      _
    $region5: #{_lambda_.5} parent=1 // pred_fallthru
      _
    // Predicated region
    $region6: #{_lambda_.5} parent=1 // pred_check
      _
    $region7: #{_lambda_.5} parent=1 // pred_check_branch
      %12 = sbr.rel (0) target = $region9
    $region8: #{_lambda_.5} parent=1 // pred_region
      _
    $region9: #{_lambda_.5} parent=1 // pred_fallthru
      _
    // Predicated region
    $region10: #{_lambda_.5} parent=1 // pred_check
      _
    $region11: #{_lambda_.5} parent=1 // pred_check_branch
      %14 = sbr.rel (0) target = $region13
    $region12: #{_lambda_.5} parent=1 // pred_region
      _
    $region13: #{_lambda_.5} parent=1 // pred_fallthru
      _
    %v16 = vld [vmem:[%s0] sm:$0xf]
    %v17 = vld [vmem:[%s0 + $0x4] sm:$0xf]
    %v18 = vld [vmem:[%s1] sm:$0xf]
    %v19 = vld [vmem:[%s1 + $0x4] sm:$0xf]
    %v20 = vld [vmem:[%s1 + $0x8] sm:$0xf]
    %v21 = vld [vmem:[%s1 + $0xc] sm:$0xf]
    %v22 = vld [vmem:[%s1 + $0x10] sm:$0xf]
    %v23 = vld [vmem:[%s1 + $0x14] sm:$0xf]
    %v24 = vld [vmem:[%s1 + $0x18] sm:$0xf]
    %v25 = vld [vmem:[%s1 + $0x1c] sm:$0xf]
    %v26 = vld [vmem:[%s1 + $0x20] sm:$0xf]
    %v27 = vld [vmem:[%s1 + $0x24] sm:$0xf]
    %v28 = vld [vmem:[%s1 + $0x28] sm:$0xf]
    %v29 = vld [vmem:[%s1 + $0x2c] sm:$0xf]
    %v30 = vld [vmem:[%s1 + $0x30] sm:$0xf]
    %v31 = vld [vmem:[%s1 + $0x34] sm:$0xf]
    %v32 = vld [vmem:[%s1 + $0x38] sm:$0xf]
    %v33 = vld [vmem:[%s1 + $0x3c] sm:$0xf]
    %v34 = vld [vmem:[%s2] sm:$0x1]
    %v36 = vlaneseq
    %v37 = vshrl.u32 %v36, 7
    %v38 = vsub.s32 0, %v37
    %v39 = vrot.slane %v34, %v38
    %v43 = vunpack.c.l.b16 %v16
    %v44 = vunpack.c.l.b16 %v17
    %v45 = vpack.c.b16 %v44, %v43
    %v63 = vunpack.c.l.b16 %v18
    %v64 = vunpack.c.l.b16 %v19
    %v65 = vunpack.c.l.b16 %v20
    %v66 = vunpack.c.l.b16 %v21
    %v67 = vunpack.c.l.b16 %v22
    %v68 = vunpack.c.l.b16 %v23
    %v69 = vunpack.c.l.b16 %v24
    %v70 = vunpack.c.l.b16 %v25
    %v71 = vunpack.c.l.b16 %v26
    %v72 = vunpack.c.l.b16 %v27
    %v73 = vunpack.c.l.b16 %v28
    %v74 = vunpack.c.l.b16 %v29
    %v75 = vunpack.c.l.b16 %v30
    %v76 = vunpack.c.l.b16 %v31
    %v77 = vunpack.c.l.b16 %v32
    %v78 = vunpack.c.l.b16 %v33
    %v79 = vpack.c.b16 %v64, %v63
    %v80 = vpack.c.b16 %v66, %v65
    %v81 = vpack.c.b16 %v68, %v67
    %v82 = vpack.c.b16 %v70, %v69
    %v83 = vpack.c.b16 %v72, %v71
    %v84 = vpack.c.b16 %v74, %v73
    %v85 = vpack.c.b16 %v76, %v75
    %v86 = vpack.c.b16 %v78, %v77
    %95 = vmatprep.subr.bf16.mxu0 0
    %96 = vmatpush1.bf16.msra.mxu0 %v86
    %97 = vmatprep.subr.bf16.mxu0 0
    %98 = vmatpush1.bf16.msra.mxu0 %v85
    %99 = vmatprep.subr.bf16.mxu0 0
    %100 = vmatpush1.bf16.msra.mxu0 %v84
    %101 = vmatprep.subr.bf16.mxu0 0
    %102 = vmatpush1.bf16.msra.mxu0 %v83
    %103 = vmatprep.subr.bf16.mxu0 0
    %104 = vmatpush1.bf16.msra.mxu0 %v82
    %105 = vmatprep.subr.bf16.mxu0 0
    %106 = vmatpush1.bf16.msra.mxu0 %v81
    %107 = vmatprep.subr.bf16.mxu0 0
    %108 = vmatpush1.bf16.msra.mxu0 %v80
    %109 = vmatprep.subr.bf16.mxu0 0
    %110 = vmatpush1.bf16.msra.mxu0 %v79
    %111 = vmatprep.subr.bf16.mxu0 0
    %112 = vmatpush2.bf16.msra.mxu0 0
    %113 = vmatprep.subr.bf16.mxu0 0
    %114 = vmatpush2.bf16.msra.mxu0 0
    %115 = vmatprep.subr.bf16.mxu0 0
    %116 = vmatpush2.bf16.msra.mxu0 0
    %117 = vmatprep.subr.bf16.mxu0 0
    %118 = vmatpush2.bf16.msra.mxu0 0
    %119 = vmatprep.subr.bf16.mxu0 0
    %120 = vmatpush2.bf16.msra.mxu0 0
    %121 = vmatprep.subr.bf16.mxu0 0
    %122 = vmatpush2.bf16.msra.mxu0 0
    %123 = vmatprep.subr.bf16.mxu0 0
    %124 = vmatpush2.bf16.msra.mxu0 0
    %125 = vmatprep.subr.bf16.mxu0 0
    %126 = vmatpush2.bf16.msra.mxu0 0
    %127 = vmatprep.mubr.bf16.mxu0 0
    %128 = vmatmul.mubr.bf16.gmra.mxu0 %v45
    %v129 = vpop.f32.mrf.mxu0
    %v130 = vadd.f32 %v39, %v129
    %v131 = vpop.f32.mrf.mxu0
    %v132 = vpop.f32.mrf.mxu0
    %v133 = vadd.f32 %v39, %v132
    %v134 = vpop.f32.mrf.mxu0
    %135 = vdwg.mxu0
    %136 = vst [vmem:[#allocation2] sm:$0xff] %v130
    %137 = vst [vmem:[#allocation2 + $0x8] sm:$0xff] %v133
    // Predicated region
    $region14: #{_lambda_.5} parent=1 // pred_check
      _
    $region15: #{_lambda_.5} parent=1 // pred_check_branch
      %139 = sbr.rel (0) target = $region17
    $region16: #{_lambda_.5} parent=1 // pred_region
      %s141 = ssub.s32 256, 256
      %142 = vsyncadd [#allocation3], %s141
      %s143 = sshll.u32 [#allocation2], 4
      %s144 = int_to_ptr.vmem [resolvable:$true] %s143
      %149 = dma.vmem_to_hbm [thread:$0]  %s144, 256, %s3, [#allocation3], 128, 128, 8
    $region17: #{_lambda_.5} parent=1 // pred_fallthru
      _
    // Predicated region
    $region18: #{_lambda_.5} parent=1 // pred_check
      _
    $region19: #{_lambda_.5} parent=1 // pred_check_branch
      %151 = sbr.rel (0) target = $region21
    $region20: #{_lambda_.5} parent=1 // pred_region
      %152 = dma.done [#allocation3], 256
    $region21: #{_lambda_.5} parent=1 // pred_fallthru
      _
    %153 = vsyncpa [#allocation3], 1

// kernel: _lambda_.3
$region0: #{_lambda_.3}
  #allocation0 [shape = 'u32[]', space=smem, size = 0x4, offset = 0x4, fixed_abs, tag = 'smem constant byte address 0x4 - core index']
  #allocation1 [shape = 'u32[144,128]{1,0:T(1,128)}', space=vmem, size = 0x12000, scoped, tag = 'internal scratch']
  %s0 = inlined_call_operand.vmem [shape: bf16[64,128], index: 0, kind: input, shape index: {}]
  %s1 = inlined_call_operand.hbm [shape: bf16[128,1024], index: 1, kind: input, shape index: {}]
  %s2 = inlined_call_operand.vmem [shape: f32[1,1024], index: 2, kind: input, shape index: {}]
  %s3 = inlined_call_operand.vmem [shape: bf16[64,1024], index: 3, kind: output, shape index: {}]
  %s4 = sld [smem:[#allocation0]]
  $region68: #{_lambda_.3} parent=0
    _
  %s6 = ssub.s32 1, %s4
  %s7 = scalar_select 0, %s6, %s4
  $region1: #{_lambda_.3} parent=0
    #allocation2 [shape = 'u8[262144]{0}', space=vmem, size = 0x40000, scoped, tag = 'input window, operand 1']
    #allocation3 [shape = 's32[2]{0}', space=sflag, size = 0x8, scoped, tag = 'scoped memory for _lambda_.3']
    #allocation4 [shape = 'u8[131072]{0}', space=vmem, size = 0x20000, scoped, tag = 'output window, operand 0']
    %8 = vsyncpa [#allocation3], 0
    %s9 = scalar_lea.sflag [#allocation3], 1
    %10 = vsyncpa %s9, 0
    loop: start=0, step=1, limit=4
    $region2: #{_lambda_.3} parent=1 // loop_pre_header
      _
    $region3: #{_lambda_.3} parent=1 // loop_header
      %s12 = sphi 0, %s16
      %p13 = scmp.ge.s32.totalorder %s12, 4
      %s19 = sphi 0, %s31
      %s20 = sphi 0, %s27
      %s21 = sphi 0, %s19
      %s22 = sphi 0, %s20
      %s23 = sphi 0, %s21
      %s24 = sphi 0, %s22
      %s34 = sphi 0, %s36
      %s37 = sphi 0, %s34
      %s38 = sphi 0, %s37
      %s54 = sphi 0, %s38
      %s60 = sphi 0, %s62
      %s63 = sphi 0, %s60
      %s64 = sphi 0, %s63
      %s80 = sphi 0, %s64
      %s86 = sphi 0, %s88
      %s89 = sphi 0, %s86
      %s90 = sphi 0, %s89
      %s106 = sphi 0, %s90
      %s114 = sphi 0, %s116
      %s117 = sphi 0, %s114
      %s118 = sphi 0, %s117
      %s134 = sphi 0, %s118
    $region4: #{_lambda_.3} parent=1 // loop_header_branch
      %15 = sbr.rel (%p13) target = $region8
    $region5: #{_lambda_.3} parent=1 // loop_body
      %s17 = ssub.s32 %s12, 1
      %s18 = ssub.s32 %s12, 2
      %s25 = sadd.s32 1, %s20
      %p26 = scmp.ge.s32.totalorder %s25, 2
      %s27 = scalar_select %p26, 0, %s25
      %s28 = sadd.s32 1, %s19
      %s29 = scalar_select %p26, %s28, %s19
      %p30 = scmp.ge.s32.totalorder %s29, 1
      %s31 = scalar_select %p30, 0, %s29
      %s32 = ssub.s32 %s19, %s31
      %p33 = scmp.eq.s32.totalorder %s32, 0
      %s35 = sadd.s32 %s34, 1
      %s36 = scalar_select %p33, %s34, %s35
      %p39 = pneg %p33
      %p40 = scmp.eq.s32.totalorder %s12, 1
      %p41 = por %p39, %p40
      %p42 = scmp.ne.s32.totalorder %s34, %s37
      %p43 = scmp.eq.s32.totalorder %s12, 0
      %p44 = por %p42, %p43
      %p45 = scmp.ne.s32.totalorder %s34, %s37
      %p46 = scmp.eq.s32.totalorder %s17, 1
      %p47 = por %p45, %p46
      %p48 = scmp.ne.s32.totalorder %s37, %s38
      %p49 = scmp.eq.s32.totalorder %s17, 0
      %p50 = por %p48, %p49
      %p51 = scmp.ne.s32.totalorder %s37, %s38
      %p52 = scmp.eq.s32.totalorder %s18, 1
      %p53 = por %p51, %p52
      %p55 = scmp.ne.s32.totalorder %s38, %s54
      %p56 = scmp.eq.s32.totalorder %s18, 0
      %p57 = por %p55, %p56
      %s58 = ssub.s32 %s20, %s27
      %p59 = scmp.eq.s32.totalorder %s58, 0
      %s61 = sadd.s32 %s60, 1
      %s62 = scalar_select %p59, %s60, %s61
      %p65 = pneg %p59
      %p66 = scmp.eq.s32.totalorder %s12, 1
      %p67 = por %p65, %p66
      %p68 = scmp.ne.s32.totalorder %s60, %s63
      %p69 = scmp.eq.s32.totalorder %s12, 0
      %p70 = por %p68, %p69
      %p71 = scmp.ne.s32.totalorder %s60, %s63
      %p72 = scmp.eq.s32.totalorder %s17, 1
      %p73 = por %p71, %p72
      %p74 = scmp.ne.s32.totalorder %s63, %s64
      %p75 = scmp.eq.s32.totalorder %s17, 0
      %p76 = por %p74, %p75
      %p77 = scmp.ne.s32.totalorder %s63, %s64
      %p78 = scmp.eq.s32.totalorder %s18, 1
      %p79 = por %p77, %p78
      %p81 = scmp.ne.s32.totalorder %s64, %s80
      %p82 = scmp.eq.s32.totalorder %s18, 0
      %p83 = por %p81, %p82
      %s84 = ssub.s32 %s20, %s27
      %p85 = scmp.eq.s32.totalorder %s84, 0
      %s87 = sadd.s32 %s86, 1
      %s88 = scalar_select %p85, %s86, %s87
      %p91 = pneg %p85
      %p92 = scmp.eq.s32.totalorder %s12, 1
      %p93 = por %p91, %p92
      %p94 = scmp.ne.s32.totalorder %s86, %s89
      %p95 = scmp.eq.s32.totalorder %s12, 0
      %p96 = por %p94, %p95
      %p97 = scmp.ne.s32.totalorder %s86, %s89
      %p98 = scmp.eq.s32.totalorder %s17, 1
      %p99 = por %p97, %p98
      %p100 = scmp.ne.s32.totalorder %s89, %s90
      %p101 = scmp.eq.s32.totalorder %s17, 0
      %p102 = por %p100, %p101
      %p103 = scmp.ne.s32.totalorder %s89, %s90
      %p104 = scmp.eq.s32.totalorder %s18, 1
      %p105 = por %p103, %p104
      %p107 = scmp.ne.s32.totalorder %s90, %s106
      %p108 = scmp.eq.s32.totalorder %s18, 0
      %p109 = por %p107, %p108
      %s110 = ssub.s32 %s19, %s31
      %s111 = ssub.s32 %s20, %s27
      %s112 = sor.u32 %s110, %s111
      %p113 = scmp.eq.s32.totalorder %s112, 0
      %s115 = sadd.s32 %s114, 1
      %s116 = scalar_select %p113, %s114, %s115
      %p119 = pneg %p113
      %p120 = scmp.eq.s32.totalorder %s12, 1
      %p121 = por %p119, %p120
      %p122 = scmp.ne.s32.totalorder %s114, %s117
      %p123 = scmp.eq.s32.totalorder %s12, 0
      %p124 = por %p122, %p123
      %p125 = scmp.ne.s32.totalorder %s114, %s117
      %p126 = scmp.eq.s32.totalorder %s17, 1
      %p127 = por %p125, %p126
      %p128 = scmp.ne.s32.totalorder %s117, %s118
      %p129 = scmp.eq.s32.totalorder %s17, 0
      %p130 = por %p128, %p129
      %p131 = scmp.ne.s32.totalorder %s117, %s118
      %p132 = scmp.eq.s32.totalorder %s18, 1
      %p133 = por %p131, %p132
      %p135 = scmp.ne.s32.totalorder %s118, %s134
      %p136 = scmp.eq.s32.totalorder %s18, 0
      %p137 = por %p135, %p136
      %p138 = scmp.le.s32.totalorder 1, %s12
      %p139 = scmp.lt.s32.totalorder %s12, 3
      %p140 = pnand %p138, %p139
      %p141 = pneg %p140
      // Predicated region
      $region9: #{_lambda_.3} parent=5 // pred_check
        _
      $region10: #{_lambda_.3} parent=5 // pred_check_branch
        %143 = sbr.rel (%p140) target = $region12
      $region11: #{_lambda_.3} parent=5 // pred_region
        %s144 = ssub.s32 %s12, 1
        // Predicated region
        $region13: #{_lambda_.3} parent=11 // pred_check
          %p145 = pneg %p50
        $region14: #{_lambda_.3} parent=11 // pred_check_branch
          %147 = sbr.rel (%p145) target = $region16
        $region15: #{_lambda_.3} parent=11 // pred_region
          %s148 = smul.u32 8, %s21
          %p149 = scmp.lt.s32.totalorder %s148, 7
          %s150 = scalar_select %p149, %s148, 7
          %s151 = smul.addr %s150, 4
          %s152 = scalar_lea.vmem %s0, %s151
          %s153 = smul.u32 8, %s21
        $region16: #{_lambda_.3} parent=11 // pred_fallthru
          _
      $region12: #{_lambda_.3} parent=5 // pred_fallthru
        _
      %p154 = scmp.lt.s32.totalorder %s12, 2
      // Predicated region
      $region17: #{_lambda_.3} parent=5 // pred_check
        %p155 = pneg %p154
      $region18: #{_lambda_.3} parent=5 // pred_check_branch
        %157 = sbr.rel (%p155) target = $region20
      $region19: #{_lambda_.3} parent=5 // pred_region
        // Predicated region
        $region21: #{_lambda_.3} parent=19 // pred_check
          %p158 = pneg %p70
        $region22: #{_lambda_.3} parent=19 // pred_check_branch
          %160 = sbr.rel (%p158) target = $region24
        $region23: #{_lambda_.3} parent=19 // pred_region
          %s161 = sand.u32 %s60, 1
          %s162 = scalar_lea.sflag [#allocation3], %s161
          %s163 = sand.u32 %s60, 1
          %s164 = smul.addr %s163, 256
          %s165 = scalar_lea.vmem [#allocation2], %s164
          %s166 = smul.u32 4, %s20
          %s168 = ssub.s32 4096, 4096
          %169 = vsyncadd %s162, %s168
          %s170 = smul.addr %s166, 64
          %s171 = scalar_lea.hbm %s1, %s170
          %s172 = sshll.u32 %s165, 4
          %s173 = int_to_ptr.vmem [resolvable:$true] %s172
          %178 = dma.hbm_to_vmem [thread:$0]  %s171, 4096, %s173, %s162, 512, 256, 16
        $region24: #{_lambda_.3} parent=19 // pred_fallthru
          _
        // Predicated region
        $region25: #{_lambda_.3} parent=19 // pred_check
          %p179 = pneg %p96
        $region26: #{_lambda_.3} parent=19 // pred_check_branch
          %181 = sbr.rel (%p179) target = $region28
        $region27: #{_lambda_.3} parent=19 // pred_region
          %s182 = smul.u32 4, %s20
          %p183 = scmp.lt.s32.totalorder %s182, 7
          %s184 = scalar_select %p183, %s182, 7
          %s185 = scalar_lea.vmem %s2, %s184
          %s186 = smul.u32 4, %s20
        $region28: #{_lambda_.3} parent=19 // pred_fallthru
          _
      $region20: #{_lambda_.3} parent=5 // pred_fallthru
        _
      %p187 = scmp.le.s32.totalorder 1, %s12
      %p188 = scmp.lt.s32.totalorder %s12, 3
      %p189 = pnand %p187, %p188
      %p190 = pneg %p189
      // Predicated region
      $region29: #{_lambda_.3} parent=5 // pred_check
        _
      $region30: #{_lambda_.3} parent=5 // pred_check_branch
        %192 = sbr.rel (%p189) target = $region32
      $region31: #{_lambda_.3} parent=5 // pred_region
        %s193 = ssub.s32 %s12, 1
        %s194 = sand.u32 %s63, 1
        %s195 = scalar_lea.sflag [#allocation3], %s194
        %s196 = sand.u32 %s63, 1
        %s197 = smul.addr %s196, 256
        %s198 = scalar_lea.vmem [#allocation2], %s197
        // Predicated region
        $region33: #{_lambda_.3} parent=31 // pred_check
          %p199 = pneg %p76
        $region34: #{_lambda_.3} parent=31 // pred_check_branch
          %201 = sbr.rel (%p199) target = $region36
        $region35: #{_lambda_.3} parent=31 // pred_region
          %202 = dma.done %s195, 4096
        $region36: #{_lambda_.3} parent=31 // pred_fallthru
          _
        %s203 = smul.u32 8, %s21
        %p204 = scmp.lt.s32.totalorder %s203, 7
        %s205 = scalar_select %p204, %s203, 7
        %s206 = smul.addr %s205, 4
        %s207 = scalar_lea.vmem %s0, %s206
        %p208 = pneg %p50
        %p209 = pneg %p47
        %s210 = sand.u32 %s63, 1
        %s211 = scalar_lea.sflag [#allocation3], %s210
        %s212 = sand.u32 %s63, 1
        %s213 = smul.addr %s212, 256
        %s214 = scalar_lea.vmem [#allocation2], %s213
        %p215 = pneg %p76
        %p216 = pneg %p73
        %s217 = smul.u32 4, %s22
        %p218 = scmp.lt.s32.totalorder %s217, 7
        %s219 = scalar_select %p218, %s217, 7
        %s220 = scalar_lea.vmem %s2, %s219
        %p221 = pneg %p102
        %p222 = pneg %p99
        %p223 = pneg %p130
        %p224 = pneg %p127
        %s225 = sand.u32 %s117, 1
        %s226 = sand.u32 %s117, 1
        %s227 = smul.addr %s226, 128
        %s228 = scalar_lea.vmem [#allocation4], %s227
        %s229 = smul.u32 8, %s21
        %p230 = scmp.lt.s32.totalorder %s229, 7
        %s231 = scalar_select %p230, %s229, 7
        %s232 = smul.addr %s231, 4
        %s233 = scalar_lea.vmem %s0, %s232
        %s234 = smul.u32 8, %s21
        %s235 = smul.u32 4, %s22
        %s236 = smul.u32 4, %s22
        %p237 = scmp.lt.s32.totalorder %s236, 7
        %s238 = scalar_select %p237, %s236, 7
        %s239 = scalar_lea.vmem %s2, %s238
        %s240 = smul.u32 4, %s22
        %s241 = smul.u32 8, %s21
        %s242 = smul.u32 4, %s22
        %v244 = vld [vmem:[%s233] sm:$0xf]
        %v245 = vld [vmem:[%s233 + $0x4] sm:$0xf]
        %v246 = vld [vmem:[%s233 + $0x8] sm:$0xf]
        %v247 = vld [vmem:[%s233 + $0xc] sm:$0xf]
        %v248 = vld [vmem:[%s233 + $0x10] sm:$0xf]
        %v249 = vld [vmem:[%s233 + $0x14] sm:$0xf]
        %v250 = vld [vmem:[%s233 + $0x18] sm:$0xf]
        %v251 = vld [vmem:[%s233 + $0x1c] sm:$0xf]
        %v252 = vld [vmem:[%s198] sm:$0xff]
        %v253 = vld [vmem:[%s198 + $0x8] sm:$0xff]
        %v254 = vld [vmem:[%s198 + $0x10] sm:$0xff]
        %v255 = vld [vmem:[%s198 + $0x18] sm:$0xff]
        %v256 = vld [vmem:[%s198 + $0x20] sm:$0xff]
        %v257 = vld [vmem:[%s198 + $0x28] sm:$0xff]
        %v258 = vld [vmem:[%s198 + $0x30] sm:$0xff]
        %v259 = vld [vmem:[%s198 + $0x38] sm:$0xff]
        %v260 = vld [vmem:[%s198 + $0x40] sm:$0xff]
        %v261 = vld [vmem:[%s198 + $0x48] sm:$0xff]
        %v262 = vld [vmem:[%s198 + $0x50] sm:$0xff]
        %v263 = vld [vmem:[%s198 + $0x58] sm:$0xff]
        %v264 = vld [vmem:[%s198 + $0x60] sm:$0xff]
        %v265 = vld [vmem:[%s198 + $0x68] sm:$0xff]
        %v266 = vld [vmem:[%s198 + $0x70] sm:$0xff]
        %v267 = vld [vmem:[%s198 + $0x78] sm:$0xff]
        %v268 = vld [vmem:[%s198 + $0x80] sm:$0xff]
        %v269 = vld [vmem:[%s198 + $0x88] sm:$0xff]
        %v270 = vld [vmem:[%s198 + $0x90] sm:$0xff]
        %v271 = vld [vmem:[%s198 + $0x98] sm:$0xff]
        %v272 = vld [vmem:[%s198 + $0xa0] sm:$0xff]
        %v273 = vld [vmem:[%s198 + $0xa8] sm:$0xff]
        %v274 = vld [vmem:[%s198 + $0xb0] sm:$0xff]
        %v275 = vld [vmem:[%s198 + $0xb8] sm:$0xff]
        %v276 = vld [vmem:[%s198 + $0xc0] sm:$0xff]
        %v277 = vld [vmem:[%s198 + $0xc8] sm:$0xff]
        %v278 = vld [vmem:[%s198 + $0xd0] sm:$0xff]
        %v279 = vld [vmem:[%s198 + $0xd8] sm:$0xff]
        %v280 = vld [vmem:[%s198 + $0xe0] sm:$0xff]
        %v281 = vld [vmem:[%s198 + $0xe8] sm:$0xff]
        %v282 = vld [vmem:[%s198 + $0xf0] sm:$0xff]
        %v283 = vld [vmem:[%s198 + $0xf8] sm:$0xff]
        %v284 = vld [vmem:[%s239] sm:$0xf]
        %v286 = vlaneseq
        %v287 = vshrl.u32 %v286, 7
        %v288 = vsub.s32 0, %v287
        %v289 = vrot.slane %v284, %v288
        %v290 = vlaneseq
        %v291 = vshrl.u32 %v290, 7
        %v292 = vsub.s32 1, %v291
        %v293 = vrot.slane %v284, %v292
        %v294 = vlaneseq
        %v295 = vshrl.u32 %v294, 7
        %v296 = vsub.s32 2, %v295
        %v297 = vrot.slane %v284, %v296
        %v298 = vlaneseq
        %v299 = vshrl.u32 %v298, 7
        %v300 = vsub.s32 3, %v299
        %v301 = vrot.slane %v284, %v300
        %v314 = vunpack.c.l.b16 %v244
        %v315 = vunpack.c.l.b16 %v245
        %v316 = vunpack.c.l.b16 %v246
        %v317 = vunpack.c.l.b16 %v247
        %v318 = vunpack.c.l.b16 %v248
        %v319 = vunpack.c.l.b16 %v249
        %v320 = vunpack.c.l.b16 %v250
        %v321 = vunpack.c.l.b16 %v251
        %v322 = vpack.c.b16 %v315, %v314
        %v323 = vpack.c.b16 %v317, %v316
        %v324 = vpack.c.b16 %v319, %v318
        %v325 = vpack.c.b16 %v321, %v320
        %v362 = vunpack.c.l.b16 %v252
        %v363 = vunpack.c.h.b16 %v252
        %v364 = vunpack.c.l.b16 %v253
        %v365 = vunpack.c.h.b16 %v253
        %v366 = vunpack.c.l.b16 %v254
        %v367 = vunpack.c.h.b16 %v254
        %v368 = vunpack.c.l.b16 %v255
        %v369 = vunpack.c.h.b16 %v255
        %v370 = vunpack.c.l.b16 %v256
        %v371 = vunpack.c.h.b16 %v256
        %v372 = vunpack.c.l.b16 %v257
        %v373 = vunpack.c.h.b16 %v257
        %v374 = vunpack.c.l.b16 %v258
        %v375 = vunpack.c.h.b16 %v258
        %v376 = vunpack.c.l.b16 %v259
        %v377 = vunpack.c.h.b16 %v259
        %v378 = vunpack.c.l.b16 %v260
        %v379 = vunpack.c.h.b16 %v260
        %v380 = vunpack.c.l.b16 %v261
        %v381 = vunpack.c.h.b16 %v261
        %v382 = vunpack.c.l.b16 %v262
        %v383 = vunpack.c.h.b16 %v262
        %v384 = vunpack.c.l.b16 %v263
        %v385 = vunpack.c.h.b16 %v263
        %v386 = vunpack.c.l.b16 %v264
        %v387 = vunpack.c.h.b16 %v264
        %v388 = vunpack.c.l.b16 %v265
        %v389 = vunpack.c.h.b16 %v265
        %v390 = vunpack.c.l.b16 %v266
        %v391 = vunpack.c.h.b16 %v266
        %v392 = vunpack.c.l.b16 %v267
        %v393 = vunpack.c.h.b16 %v267
        %v394 = vunpack.c.l.b16 %v268
        %v395 = vunpack.c.h.b16 %v268
        %v396 = vunpack.c.l.b16 %v269
        %v397 = vunpack.c.h.b16 %v269
        %v398 = vunpack.c.l.b16 %v270
        %v399 = vunpack.c.h.b16 %v270
        %v400 = vunpack.c.l.b16 %v271
        %v401 = vunpack.c.h.b16 %v271
        %v402 = vunpack.c.l.b16 %v272
        %v403 = vunpack.c.h.b16 %v272
        %v404 = vunpack.c.l.b16 %v273
        %v405 = vunpack.c.h.b16 %v273
        %v406 = vunpack.c.l.b16 %v274
        %v407 = vunpack.c.h.b16 %v274
        %v408 = vunpack.c.l.b16 %v275
        %v409 = vunpack.c.h.b16 %v275
        %v410 = vunpack.c.l.b16 %v276
        %v411 = vunpack.c.h.b16 %v276
        %v412 = vunpack.c.l.b16 %v277
        %v413 = vunpack.c.h.b16 %v277
        %v414 = vunpack.c.l.b16 %v278
        %v415 = vunpack.c.h.b16 %v278
        %v416 = vunpack.c.l.b16 %v279
        %v417 = vunpack.c.h.b16 %v279
        %v418 = vunpack.c.l.b16 %v280
        %v419 = vunpack.c.h.b16 %v280
        %v420 = vunpack.c.l.b16 %v281
        %v421 = vunpack.c.h.b16 %v281
        %v422 = vunpack.c.l.b16 %v282
        %v423 = vunpack.c.h.b16 %v282
        %v424 = vunpack.c.l.b16 %v283
        %v425 = vunpack.c.h.b16 %v283
        %v426 = vpack.c.b16 %v366, %v362
        %v427 = vpack.c.b16 %v367, %v363
        %v428 = vpack.c.b16 %v368, %v364
        %v429 = vpack.c.b16 %v369, %v365
        %v430 = vpack.c.b16 %v374, %v370
        %v431 = vpack.c.b16 %v375, %v371
        %v432 = vpack.c.b16 %v376, %v372
        %v433 = vpack.c.b16 %v377, %v373
        %v434 = vpack.c.b16 %v382, %v378
        %v435 = vpack.c.b16 %v383, %v379
        %v436 = vpack.c.b16 %v384, %v380
        %v437 = vpack.c.b16 %v385, %v381
        %v438 = vpack.c.b16 %v390, %v386
        %v439 = vpack.c.b16 %v391, %v387
        %v440 = vpack.c.b16 %v392, %v388
        %v441 = vpack.c.b16 %v393, %v389
        %v442 = vpack.c.b16 %v398, %v394
        %v443 = vpack.c.b16 %v399, %v395
        %v444 = vpack.c.b16 %v400, %v396
        %v445 = vpack.c.b16 %v401, %v397
        %v446 = vpack.c.b16 %v406, %v402
        %v447 = vpack.c.b16 %v407, %v403
        %v448 = vpack.c.b16 %v408, %v404
        %v449 = vpack.c.b16 %v409, %v405
        %v450 = vpack.c.b16 %v414, %v410
        %v451 = vpack.c.b16 %v415, %v411
        %v452 = vpack.c.b16 %v416, %v412
        %v453 = vpack.c.b16 %v417, %v413
        %v454 = vpack.c.b16 %v422, %v418
        %v455 = vpack.c.b16 %v423, %v419
        %v456 = vpack.c.b16 %v424, %v420
        %v457 = vpack.c.b16 %v425, %v421
        %490 = vmatprep.subr.bf16.mxu0 %v455
        %491 = vmatpush1.bf16.msra.mxu0 %v454
        %492 = vmatprep.subr.bf16.mxu0 %v451
        %493 = vmatpush1.bf16.msra.mxu0 %v450
        %494 = vmatprep.subr.bf16.mxu0 %v447
        %495 = vmatpush1.bf16.msra.mxu0 %v446
        %496 = vmatprep.subr.bf16.mxu0 %v443
        %497 = vmatpush1.bf16.msra.mxu0 %v442
        %498 = vmatprep.subr.bf16.mxu0 %v439
        %499 = vmatpush1.bf16.msra.mxu0 %v438
        %500 = vmatprep.subr.bf16.mxu0 %v435
        %501 = vmatpush1.bf16.msra.mxu0 %v434
        %502 = vmatprep.subr.bf16.mxu0 %v431
        %503 = vmatpush1.bf16.msra.mxu0 %v430
        %504 = vmatprep.subr.bf16.mxu0 %v427
        %505 = vmatpush1.bf16.msra.mxu0 %v426
        %506 = vmatprep.subr.bf16.mxu0 0
        %507 = vmatpush2.bf16.msra.mxu0 0
        %508 = vmatprep.subr.bf16.mxu0 0
        %509 = vmatpush2.bf16.msra.mxu0 0
        %510 = vmatprep.subr.bf16.mxu0 0
        %511 = vmatpush2.bf16.msra.mxu0 0
        %512 = vmatprep.subr.bf16.mxu0 0
        %513 = vmatpush2.bf16.msra.mxu0 0
        %514 = vmatprep.subr.bf16.mxu0 0
        %515 = vmatpush2.bf16.msra.mxu0 0
        %516 = vmatprep.subr.bf16.mxu0 0
        %517 = vmatpush2.bf16.msra.mxu0 0
        %518 = vmatprep.subr.bf16.mxu0 0
        %519 = vmatpush2.bf16.msra.mxu0 0
        %520 = vmatprep.subr.bf16.mxu0 0
        %521 = vmatpush2.bf16.msra.mxu0 0
        %522 = vmatprep.mubr.bf16.mxu0 0
        %523 = vmatmul.mubr.bf16.gmra.mxu0 %v322
        %v524 = vpop.f32.mrf.mxu0
        %v525 = vadd.f32 %v289, %v524
        %v526 = vpop.f32.mrf.mxu0
        %v527 = vadd.f32 %v293, %v526
        %v528 = vpop.f32.mrf.mxu0
        %v529 = vadd.f32 %v289, %v528
        %v530 = vpop.f32.mrf.mxu0
        %v531 = vadd.f32 %v293, %v530
        %532 = vmatprep.mubr.bf16.mxu0 0
        %533 = vmatmul.mubr.bf16.gmra.mxu0 %v323
        %v534 = vpop.f32.mrf.mxu0
        %v535 = vadd.f32 %v289, %v534
        %v536 = vpop.f32.mrf.mxu0
        %v537 = vadd.f32 %v293, %v536
        %v538 = vpop.f32.mrf.mxu0
        %v539 = vadd.f32 %v289, %v538
        %v540 = vpop.f32.mrf.mxu0
        %v541 = vadd.f32 %v293, %v540
        %542 = vmatprep.mubr.bf16.mxu0 0
        %543 = vmatmul.mubr.bf16.gmra.mxu0 %v324
        %v544 = vpop.f32.mrf.mxu0
        %v545 = vadd.f32 %v289, %v544
        %v546 = vpop.f32.mrf.mxu0
        %v547 = vadd.f32 %v293, %v546
        %v548 = vpop.f32.mrf.mxu0
        %v549 = vadd.f32 %v289, %v548
        %v550 = vpop.f32.mrf.mxu0
        %v551 = vadd.f32 %v293, %v550
        %552 = vmatprep.mubr.bf16.mxu0 0
        %553 = vmatmul.mubr.bf16.gmra.mxu0 %v325
        %v554 = vpop.f32.mrf.mxu0
        %v555 = vadd.f32 %v289, %v554
        %v556 = vpop.f32.mrf.mxu0
        %v557 = vadd.f32 %v293, %v556
        %v558 = vpop.f32.mrf.mxu0
        %v559 = vadd.f32 %v289, %v558
        %v560 = vpop.f32.mrf.mxu0
        %v561 = vadd.f32 %v293, %v560
        %562 = vdwg.mxu0
        %563 = vmatprep.subr.bf16.mxu0 %v457
        %564 = vmatpush1.bf16.msra.mxu0 %v456
        %565 = vmatprep.subr.bf16.mxu0 %v453
        %566 = vmatpush1.bf16.msra.mxu0 %v452
        %567 = vmatprep.subr.bf16.mxu0 %v449
        %568 = vmatpush1.bf16.msra.mxu0 %v448
        %569 = vmatprep.subr.bf16.mxu0 %v445
        %570 = vmatpush1.bf16.msra.mxu0 %v444
        %571 = vmatprep.subr.bf16.mxu0 %v441
        %572 = vmatpush1.bf16.msra.mxu0 %v440
        %573 = vmatprep.subr.bf16.mxu0 %v437
        %574 = vmatpush1.bf16.msra.mxu0 %v436
        %575 = vmatprep.subr.bf16.mxu0 %v433
        %576 = vmatpush1.bf16.msra.mxu0 %v432
        %577 = vmatprep.subr.bf16.mxu0 %v429
        %578 = vmatpush1.bf16.msra.mxu0 %v428
        %579 = vmatprep.subr.bf16.mxu0 0
        %580 = vmatpush2.bf16.msra.mxu0 0
        %581 = vmatprep.subr.bf16.mxu0 0
        %582 = vmatpush2.bf16.msra.mxu0 0
        %583 = vmatprep.subr.bf16.mxu0 0
        %584 = vmatpush2.bf16.msra.mxu0 0
        %585 = vmatprep.subr.bf16.mxu0 0
        %586 = vmatpush2.bf16.msra.mxu0 0
        %587 = vmatprep.subr.bf16.mxu0 0
        %588 = vmatpush2.bf16.msra.mxu0 0
        %589 = vmatprep.subr.bf16.mxu0 0
        %590 = vmatpush2.bf16.msra.mxu0 0
        %591 = vmatprep.subr.bf16.mxu0 0
        %592 = vmatpush2.bf16.msra.mxu0 0
        %593 = vmatprep.subr.bf16.mxu0 0
        %594 = vmatpush2.bf16.msra.mxu0 0
        %595 = vmatprep.mubr.bf16.mxu0 0
        %596 = vmatmul.mubr.bf16.gmra.mxu0 %v322
        %v597 = vpop.f32.mrf.mxu0
        %v598 = vadd.f32 %v297, %v597
        %v599 = vpop.f32.mrf.mxu0
        %v600 = vadd.f32 %v301, %v599
        %v601 = vpop.f32.mrf.mxu0
        %v602 = vadd.f32 %v297, %v601
        %v603 = vpop.f32.mrf.mxu0
        %v604 = vadd.f32 %v301, %v603
        %605 = vmatprep.mubr.bf16.mxu0 0
        %606 = vmatmul.mubr.bf16.gmra.mxu0 %v323
        %v607 = vpop.f32.mrf.mxu0
        %v608 = vadd.f32 %v297, %v607
        %v609 = vpop.f32.mrf.mxu0
        %v610 = vadd.f32 %v301, %v609
        %v611 = vpop.f32.mrf.mxu0
        %v612 = vadd.f32 %v297, %v611
        %v613 = vpop.f32.mrf.mxu0
        %v614 = vadd.f32 %v301, %v613
        %615 = vmatprep.mubr.bf16.mxu0 0
        %616 = vmatmul.mubr.bf16.gmra.mxu0 %v324
        %v617 = vpop.f32.mrf.mxu0
        %v618 = vadd.f32 %v297, %v617
        %v619 = vpop.f32.mrf.mxu0
        %v620 = vadd.f32 %v301, %v619
        %v621 = vpop.f32.mrf.mxu0
        %v622 = vadd.f32 %v297, %v621
        %v623 = vpop.f32.mrf.mxu0
        %v624 = vadd.f32 %v301, %v623
        %625 = vmatprep.mubr.bf16.mxu0 0
        %626 = vmatmul.mubr.bf16.gmra.mxu0 %v325
        %v627 = vpop.f32.mrf.mxu0
        %v628 = vadd.f32 %v297, %v627
        %v629 = vpop.f32.mrf.mxu0
        %v630 = vadd.f32 %v301, %v629
        %v631 = vpop.f32.mrf.mxu0
        %v632 = vadd.f32 %v297, %v631
        %v633 = vpop.f32.mrf.mxu0
        %v634 = vadd.f32 %v301, %v633
        %635 = vdwg.mxu0
        %v636 = vpack.c.bf16 %v529, %v525
        %v637 = vpack.c.bf16 %v531, %v527
        %v638 = vpack.c.bf16 %v602, %v598
        %v639 = vpack.c.bf16 %v604, %v600
        %v640 = vpack.c.bf16 %v539, %v535
        %v641 = vpack.c.bf16 %v541, %v537
        %v642 = vpack.c.bf16 %v612, %v608
        %v643 = vpack.c.bf16 %v614, %v610
        %v644 = vpack.c.bf16 %v549, %v545
        %v645 = vpack.c.bf16 %v551, %v547
        %v646 = vpack.c.bf16 %v622, %v618
        %v647 = vpack.c.bf16 %v624, %v620
        %v648 = vpack.c.bf16 %v559, %v555
        %v649 = vpack.c.bf16 %v561, %v557
        %v650 = vpack.c.bf16 %v632, %v628
        %v651 = vpack.c.bf16 %v634, %v630
        %v668 = vunpack.c.l.b16 %v636
        %v669 = vunpack.c.l.b16 %v637
        %v670 = vunpack.c.l.b16 %v638
        %v671 = vunpack.c.l.b16 %v639
        %v672 = vunpack.c.h.b16 %v636
        %v673 = vunpack.c.h.b16 %v637
        %v674 = vunpack.c.h.b16 %v638
        %v675 = vunpack.c.h.b16 %v639
        %v676 = vunpack.c.l.b16 %v640
        %v677 = vunpack.c.l.b16 %v641
        %v678 = vunpack.c.l.b16 %v642
        %v679 = vunpack.c.l.b16 %v643
        %v680 = vunpack.c.h.b16 %v640
        %v681 = vunpack.c.h.b16 %v641
        %v682 = vunpack.c.h.b16 %v642
        %v683 = vunpack.c.h.b16 %v643
        %v684 = vunpack.c.l.b16 %v644
        %v685 = vunpack.c.l.b16 %v645
        %v686 = vunpack.c.l.b16 %v646
        %v687 = vunpack.c.l.b16 %v647
        %v688 = vunpack.c.h.b16 %v644
        %v689 = vunpack.c.h.b16 %v645
        %v690 = vunpack.c.h.b16 %v646
        %v691 = vunpack.c.h.b16 %v647
        %v692 = vunpack.c.l.b16 %v648
        %v693 = vunpack.c.l.b16 %v649
        %v694 = vunpack.c.l.b16 %v650
        %v695 = vunpack.c.l.b16 %v651
        %v696 = vunpack.c.h.b16 %v648
        %v697 = vunpack.c.h.b16 %v649
        %v698 = vunpack.c.h.b16 %v650
        %v699 = vunpack.c.h.b16 %v651
        %v700 = vpack.c.b16 %v669, %v668
        %v701 = vpack.c.b16 %v671, %v670
        %v702 = vpack.c.b16 %v673, %v672
        %v703 = vpack.c.b16 %v675, %v674
        %v704 = vpack.c.b16 %v677, %v676
        %v705 = vpack.c.b16 %v679, %v678
        %v706 = vpack.c.b16 %v681, %v680
        %v707 = vpack.c.b16 %v683, %v682
        %v708 = vpack.c.b16 %v685, %v684
        %v709 = vpack.c.b16 %v687, %v686
        %v710 = vpack.c.b16 %v689, %v688
        %v711 = vpack.c.b16 %v691, %v690
        %v712 = vpack.c.b16 %v693, %v692
        %v713 = vpack.c.b16 %v695, %v694
        %v714 = vpack.c.b16 %v697, %v696
        %v715 = vpack.c.b16 %v699, %v698
        %732 = vst [vmem:[%s228] sm:$0xff] %v700
        %733 = vst [vmem:[%s228 + $0x8] sm:$0xff] %v701
        %734 = vst [vmem:[%s228 + $0x10] sm:$0xff] %v702
        %735 = vst [vmem:[%s228 + $0x18] sm:$0xff] %v703
        %736 = vst [vmem:[%s228 + $0x20] sm:$0xff] %v704
        %737 = vst [vmem:[%s228 + $0x28] sm:$0xff] %v705
        %738 = vst [vmem:[%s228 + $0x30] sm:$0xff] %v706
        %739 = vst [vmem:[%s228 + $0x38] sm:$0xff] %v707
        %740 = vst [vmem:[%s228 + $0x40] sm:$0xff] %v708
        %741 = vst [vmem:[%s228 + $0x48] sm:$0xff] %v709
        %742 = vst [vmem:[%s228 + $0x50] sm:$0xff] %v710
        %743 = vst [vmem:[%s228 + $0x58] sm:$0xff] %v711
        %744 = vst [vmem:[%s228 + $0x60] sm:$0xff] %v712
        %745 = vst [vmem:[%s228 + $0x68] sm:$0xff] %v713
        %746 = vst [vmem:[%s228 + $0x70] sm:$0xff] %v714
        %747 = vst [vmem:[%s228 + $0x78] sm:$0xff] %v715
        %s748 = sand.u32 %s117, 1
        %s749 = sand.u32 %s117, 1
        %s750 = smul.addr %s749, 128
        %s751 = scalar_lea.vmem [#allocation4], %s750
        // Predicated region
        $region37: #{_lambda_.3} parent=31 // pred_check
          %p752 = pneg %p127
        $region38: #{_lambda_.3} parent=31 // pred_check_branch
          %754 = sbr.rel (%p752) target = $region40
        $region39: #{_lambda_.3} parent=31 // pred_region
          %s755 = smul.u32 8, %s21
          %s756 = smul.u32 4, %s22
          %s757 = smul.addr %s755, 8
          %s758 = sadd.s32 %s756, %s757
          %s759 = smul.addr %s758, 4
          %s760 = scalar_lea.vmem %s3, %s759
          // Predicated region
          $region41: #{_lambda_.3} parent=39 // pred_check
            _
          $region42: #{_lambda_.3} parent=39 // pred_check_branch
            %762 = sbr.rel (0) target = $region44
          $region43: #{_lambda_.3} parent=39 // pred_region
            // Predicated region
            $region45: #{_lambda_.3} parent=43 // pred_check
              _
            $region46: #{_lambda_.3} parent=43 // pred_check_branch
              %764 = sbr.rel (0) target = $region48
            $region47: #{_lambda_.3} parent=43 // pred_region
              loop: start=0, step=1, limit=1
              $region49: #{_lambda_.3} parent=47 // loop_pre_header
                _
              $region50: #{_lambda_.3} parent=47 // loop_header
                %s766 = sphi 0, %s770
                %p767 = scmp.ge.s32.totalorder %s766, 1
                %s771 = sphi %s751, %s751
                %s772 = sphi %s760, %s760
              $region51: #{_lambda_.3} parent=47 // loop_header_branch
                %769 = sbr.rel (%p767) target = $region55
              $region52: #{_lambda_.3} parent=47 // loop_body
                %v773 = vld [vmem:[%s771] sm:$0xff]
                %774 = vst [vmem:[%s772] sm:$0xff] %v773
                %v775 = vld [vmem:[%s771 + $0x8] sm:$0xff]
                %776 = vst [vmem:[%s772 + $0x8] sm:$0xff] %v775
                %v777 = vld [vmem:[%s771 + $0x10] sm:$0xff]
                %778 = vst [vmem:[%s772 + $0x20] sm:$0xff] %v777
                %v779 = vld [vmem:[%s771 + $0x18] sm:$0xff]
                %780 = vst [vmem:[%s772 + $0x28] sm:$0xff] %v779
                %v781 = vld [vmem:[%s771 + $0x20] sm:$0xff]
                %782 = vst [vmem:[%s772 + $0x40] sm:$0xff] %v781
                %v783 = vld [vmem:[%s771 + $0x28] sm:$0xff]
                %784 = vst [vmem:[%s772 + $0x48] sm:$0xff] %v783
                %v785 = vld [vmem:[%s771 + $0x30] sm:$0xff]
                %786 = vst [vmem:[%s772 + $0x60] sm:$0xff] %v785
                %v787 = vld [vmem:[%s771 + $0x38] sm:$0xff]
                %788 = vst [vmem:[%s772 + $0x68] sm:$0xff] %v787
                %v789 = vld [vmem:[%s771 + $0x40] sm:$0xff]
                %790 = vst [vmem:[%s772 + $0x80] sm:$0xff] %v789
                %v791 = vld [vmem:[%s771 + $0x48] sm:$0xff]
                %792 = vst [vmem:[%s772 + $0x88] sm:$0xff] %v791
                %v793 = vld [vmem:[%s771 + $0x50] sm:$0xff]
                %794 = vst [vmem:[%s772 + $0xa0] sm:$0xff] %v793
                %v795 = vld [vmem:[%s771 + $0x58] sm:$0xff]
                %796 = vst [vmem:[%s772 + $0xa8] sm:$0xff] %v795
                %v797 = vld [vmem:[%s771 + $0x60] sm:$0xff]
                %798 = vst [vmem:[%s772 + $0xc0] sm:$0xff] %v797
                %v799 = vld [vmem:[%s771 + $0x68] sm:$0xff]
                %800 = vst [vmem:[%s772 + $0xc8] sm:$0xff] %v799
                %v801 = vld [vmem:[%s771 + $0x70] sm:$0xff]
                %802 = vst [vmem:[%s772 + $0xe0] sm:$0xff] %v801
                %v803 = vld [vmem:[%s771 + $0x78] sm:$0xff]
                %804 = vst [vmem:[%s772 + $0xe8] sm:$0xff] %v803
              $region53: #{_lambda_.3} parent=47 // loop_footer
                %s770 = sadd.s32 1, %s766
              $region54: #{_lambda_.3} parent=47 // loop_footer_branch
                %765 = sbr.rel target = $region50
              $region55: #{_lambda_.3} parent=47 // loop_exit
                _
            $region48: #{_lambda_.3} parent=43 // pred_fallthru
              _
            // Predicated region
            $region56: #{_lambda_.3} parent=43 // pred_check
              _
            $region57: #{_lambda_.3} parent=43 // pred_check_branch
              %806 = sbr.rel target = $region59
            $region58: #{_lambda_.3} parent=43 // pred_region
              _
            $region59: #{_lambda_.3} parent=43 // pred_fallthru
              _
          $region44: #{_lambda_.3} parent=39 // pred_fallthru
            _
          %807 = vnop
        $region40: #{_lambda_.3} parent=31 // pred_fallthru
          _
      $region32: #{_lambda_.3} parent=5 // pred_fallthru
        _
      %p808 = scmp.le.s32.totalorder 2, %s12
      // Predicated region
      $region60: #{_lambda_.3} parent=5 // pred_check
        %p809 = pneg %p808
      $region61: #{_lambda_.3} parent=5 // pred_check_branch
        %811 = sbr.rel (%p809) target = $region63
      $region62: #{_lambda_.3} parent=5 // pred_region
        %s812 = ssub.s32 %s12, 2
        // Predicated region
        $region64: #{_lambda_.3} parent=62 // pred_check
          %p813 = pneg %p133
        $region65: #{_lambda_.3} parent=62 // pred_check_branch
          %815 = sbr.rel (%p813) target = $region67
        $region66: #{_lambda_.3} parent=62 // pred_region
          %s816 = sand.u32 %s118, 1
          %s817 = sand.u32 %s118, 1
          %s818 = smul.addr %s817, 128
          %s819 = scalar_lea.vmem [#allocation4], %s818
        $region67: #{_lambda_.3} parent=62 // pred_fallthru
          _
      $region63: #{_lambda_.3} parent=5 // pred_fallthru
        _
    $region6: #{_lambda_.3} parent=1 // loop_footer
      %s16 = sadd.s32 1, %s12
    $region7: #{_lambda_.3} parent=1 // loop_footer_branch
      %11 = sbr.rel target = $region3
    $region8: #{_lambda_.3} parent=1 // loop_exit
      _
    %820 = vsyncpa [#allocation3], 1
    %s821 = scalar_lea.sflag [#allocation3], 1
    %822 = vsyncpa %s821, 1

// kernel: _lambda_.4
$region0: #{_lambda_.4}
  #allocation0 [shape = 'u32[]', space=smem, size = 0x4, offset = 0x4, fixed_abs, tag = 'smem constant byte address 0x4 - core index']
  #allocation1 [shape = 'u32[144,128]{1,0:T(1,128)}', space=vmem, size = 0x12000, scoped, tag = 'internal scratch']
  #allocation2 [shape = 'f32[2,8,128]{2,1,0:T(8,128)}', space=vmem, size = 0x2000, scoped, tag = 'scratch operand']
  #allocation3 [shape = 'f32[2,8,128]{2,1,0:T(8,128)}', space=vmem, size = 0x2000, scoped, tag = 'scratch operand']
  %s0 = inlined_call_operand.vmem [shape: bf16[8,8,1024], index: 0, kind: input, shape index: {}]
  %s1 = inlined_call_operand.vmem [shape: bf16[2,128,512], index: 1, kind: input, shape index: {}]
  %s2 = inlined_call_operand.vmem [shape: f32[2,8,128], index: 2, kind: input, shape index: {}, may-alias: {2,3}]
  %s3 = inlined_call_operand.vmem [shape: f32[2,8,128], index: 3, kind: input, shape index: {}, may-alias: {2,3}]
  %s4 = inlined_call_operand.vmem [shape: bf16[8,8,128], index: 4, kind: output, shape index: {0}]
  %s5 = inlined_call_operand.vmem [shape: f32[2,8,128], index: 5, kind: output, shape index: {1}]
  %s6 = inlined_call_operand.vmem [shape: f32[2,8,128], index: 6, kind: output, shape index: {2}]
  %7 = xla_tuple %s4, %s5, %s6
  %s8 = sld [smem:[#allocation0]]
  $region57: #{_lambda_.4} parent=0
    _
  %s10 = ssub.s32 1, %s8
  %s11 = scalar_select 0, %s10, %s8
  // Predicated region
  $region2: #{_lambda_.4} parent=0 // pred_check
    _
  $region3: #{_lambda_.4} parent=0 // pred_check_branch
    %13 = sbr.rel (0) target = $region5
  $region4: #{_lambda_.4} parent=0 // pred_region
    _
  $region5: #{_lambda_.4} parent=0 // pred_fallthru
    _
  // Predicated region
  $region6: #{_lambda_.4} parent=0 // pred_check
    _
  $region7: #{_lambda_.4} parent=0 // pred_check_branch
    %15 = sbr.rel (0) target = $region9
  $region8: #{_lambda_.4} parent=0 // pred_region
    _
  $region9: #{_lambda_.4} parent=0 // pred_fallthru
    _
  // Predicated region
  $region10: #{_lambda_.4} parent=0 // pred_check
    _
  $region11: #{_lambda_.4} parent=0 // pred_check_branch
    %17 = sbr.rel (0) target = $region13
  $region12: #{_lambda_.4} parent=0 // pred_region
    _
  $region13: #{_lambda_.4} parent=0 // pred_fallthru
    _
  // Predicated region
  $region14: #{_lambda_.4} parent=0 // pred_check
    _
  $region15: #{_lambda_.4} parent=0 // pred_check_branch
    %19 = sbr.rel (0) target = $region17
  $region16: #{_lambda_.4} parent=0 // pred_region
    _
  $region17: #{_lambda_.4} parent=0 // pred_fallthru
    _
  %p21 = scmp.eq.s32.totalorder 0, 0
  // Predicated region
  $region18: #{_lambda_.4} parent=0 // pred_check
    %p22 = pneg %p21
  $region19: #{_lambda_.4} parent=0 // pred_check_branch
    %24 = sbr.rel (%p22) target = $region21
  $region20: #{_lambda_.4} parent=0 // pred_region
    %v25 = vld [vmem:[%s2] sm:$0xff]
    %v26 = vld [vmem:[%s2 + $0x8] sm:$0xff]
    %27 = vst [vmem:[#allocation2] sm:$0xff] %v25
    %28 = vst [vmem:[#allocation2 + $0x8] sm:$0xff] %v26
    %v29 = vld [vmem:[%s3] sm:$0xff]
    %v30 = vld [vmem:[%s3 + $0x8] sm:$0xff]
    %31 = vst [vmem:[#allocation3] sm:$0xff] %v29
    %32 = vst [vmem:[#allocation3 + $0x8] sm:$0xff] %v30
  $region21: #{_lambda_.4} parent=0 // pred_fallthru
    _
  loop: start=0, step=1, limit=8
  $region22: #{_lambda_.4} parent=0 // loop_pre_header
    _
  $region23: #{_lambda_.4} parent=0 // loop_header
    %s34 = sphi 0, %s38
    %p35 = scmp.ge.s32.totalorder %s34, 8
  $region24: #{_lambda_.4} parent=0 // loop_header_branch
    %37 = sbr.rel (%p35) target = $region28
  $region25: #{_lambda_.4} parent=0 // loop_body
    %s39 = smul.u32 %s34, 8
    %s40 = smul.addr %s39, 4
    %s41 = scalar_lea.vmem %s0, %s40
    %v42 = vld [vmem:[%s41] sm:$0xff]
    %v43 = vld [vmem:[%s41 + $0x8] sm:$0xff]
    %v44 = vld [vmem:[%s41 + $0x10] sm:$0xff]
    %v45 = vld [vmem:[%s41 + $0x18] sm:$0xff]
    %v46 = vunpack.c.l.bf16 %v42
    %v47 = vunpack.c.h.bf16 %v42
    %v48 = vunpack.c.l.bf16 %v43
    %v49 = vunpack.c.h.bf16 %v43
    %v50 = vunpack.c.l.bf16 %v44
    %v51 = vunpack.c.h.bf16 %v44
    %v52 = vunpack.c.l.bf16 %v45
    %v53 = vunpack.c.h.bf16 %v45
    %v54 = vld [vmem:[#allocation2] sm:$0xff]
    %v55 = vpack.c.bf16 %v54, %v54
    %v56 = vld [vmem:[%s1] sm:$0xff]
    %v57 = vld [vmem:[%s1 + $0x8] sm:$0xff]
    %v58 = vld [vmem:[%s1 + $0x10] sm:$0xff]
    %v59 = vld [vmem:[%s1 + $0x18] sm:$0xff]
    %v60 = vld [vmem:[%s1 + $0x20] sm:$0xff]
    %v61 = vld [vmem:[%s1 + $0x28] sm:$0xff]
    %v62 = vld [vmem:[%s1 + $0x30] sm:$0xff]
    %v63 = vld [vmem:[%s1 + $0x38] sm:$0xff]
    %v64 = vld [vmem:[%s1 + $0x40] sm:$0xff]
    %v65 = vld [vmem:[%s1 + $0x48] sm:$0xff]
    %v66 = vld [vmem:[%s1 + $0x50] sm:$0xff]
    %v67 = vld [vmem:[%s1 + $0x58] sm:$0xff]
    %v68 = vld [vmem:[%s1 + $0x60] sm:$0xff]
    %v69 = vld [vmem:[%s1 + $0x68] sm:$0xff]
    %v70 = vld [vmem:[%s1 + $0x70] sm:$0xff]
    %v71 = vld [vmem:[%s1 + $0x78] sm:$0xff]
    %v72 = vld [vmem:[%s1 + $0x80] sm:$0xff]
    %v73 = vld [vmem:[%s1 + $0x88] sm:$0xff]
    %v74 = vld [vmem:[%s1 + $0x90] sm:$0xff]
    %v75 = vld [vmem:[%s1 + $0x98] sm:$0xff]
    %v76 = vld [vmem:[%s1 + $0xa0] sm:$0xff]
    %v77 = vld [vmem:[%s1 + $0xa8] sm:$0xff]
    %v78 = vld [vmem:[%s1 + $0xb0] sm:$0xff]
    %v79 = vld [vmem:[%s1 + $0xb8] sm:$0xff]
    %v80 = vld [vmem:[%s1 + $0xc0] sm:$0xff]
    %v81 = vld [vmem:[%s1 + $0xc8] sm:$0xff]
    %v82 = vld [vmem:[%s1 + $0xd0] sm:$0xff]
    %v83 = vld [vmem:[%s1 + $0xd8] sm:$0xff]
    %v84 = vld [vmem:[%s1 + $0xe0] sm:$0xff]
    %v85 = vld [vmem:[%s1 + $0xe8] sm:$0xff]
    %v86 = vld [vmem:[%s1 + $0xf0] sm:$0xff]
    %v87 = vld [vmem:[%s1 + $0xf8] sm:$0xff]
    %v120 = vunpack.c.l.b16 %v56
    %v121 = vunpack.c.h.b16 %v56
    %v122 = vunpack.c.l.b16 %v57
    %v123 = vunpack.c.h.b16 %v57
    %v124 = vunpack.c.l.b16 %v58
    %v125 = vunpack.c.h.b16 %v58
    %v126 = vunpack.c.l.b16 %v59
    %v127 = vunpack.c.h.b16 %v59
    %v128 = vunpack.c.l.b16 %v60
    %v129 = vunpack.c.h.b16 %v60
    %v130 = vunpack.c.l.b16 %v61
    %v131 = vunpack.c.h.b16 %v61
    %v132 = vunpack.c.l.b16 %v62
    %v133 = vunpack.c.h.b16 %v62
    %v134 = vunpack.c.l.b16 %v63
    %v135 = vunpack.c.h.b16 %v63
    %v136 = vunpack.c.l.b16 %v64
    %v137 = vunpack.c.h.b16 %v64
    %v138 = vunpack.c.l.b16 %v65
    %v139 = vunpack.c.h.b16 %v65
    %v140 = vunpack.c.l.b16 %v66
    %v141 = vunpack.c.h.b16 %v66
    %v142 = vunpack.c.l.b16 %v67
    %v143 = vunpack.c.h.b16 %v67
    %v144 = vunpack.c.l.b16 %v68
    %v145 = vunpack.c.h.b16 %v68
    %v146 = vunpack.c.l.b16 %v69
    %v147 = vunpack.c.h.b16 %v69
    %v148 = vunpack.c.l.b16 %v70
    %v149 = vunpack.c.h.b16 %v70
    %v150 = vunpack.c.l.b16 %v71
    %v151 = vunpack.c.h.b16 %v71
    %v152 = vunpack.c.l.b16 %v72
    %v153 = vunpack.c.h.b16 %v72
    %v154 = vunpack.c.l.b16 %v73
    %v155 = vunpack.c.h.b16 %v73
    %v156 = vunpack.c.l.b16 %v74
    %v157 = vunpack.c.h.b16 %v74
    %v158 = vunpack.c.l.b16 %v75
    %v159 = vunpack.c.h.b16 %v75
    %v160 = vunpack.c.l.b16 %v76
    %v161 = vunpack.c.h.b16 %v76
    %v162 = vunpack.c.l.b16 %v77
    %v163 = vunpack.c.h.b16 %v77
    %v164 = vunpack.c.l.b16 %v78
    %v165 = vunpack.c.h.b16 %v78
    %v166 = vunpack.c.l.b16 %v79
    %v167 = vunpack.c.h.b16 %v79
    %v168 = vunpack.c.l.b16 %v80
    %v169 = vunpack.c.h.b16 %v80
    %v170 = vunpack.c.l.b16 %v81
    %v171 = vunpack.c.h.b16 %v81
    %v172 = vunpack.c.l.b16 %v82
    %v173 = vunpack.c.h.b16 %v82
    %v174 = vunpack.c.l.b16 %v83
    %v175 = vunpack.c.h.b16 %v83
    %v176 = vunpack.c.l.b16 %v84
    %v177 = vunpack.c.h.b16 %v84
    %v178 = vunpack.c.l.b16 %v85
    %v179 = vunpack.c.h.b16 %v85
    %v180 = vunpack.c.l.b16 %v86
    %v181 = vunpack.c.h.b16 %v86
    %v182 = vunpack.c.l.b16 %v87
    %v183 = vunpack.c.h.b16 %v87
    %v184 = vpack.c.b16 %v124, %v120
    %v185 = vpack.c.b16 %v125, %v121
    %v186 = vpack.c.b16 %v126, %v122
    %v187 = vpack.c.b16 %v127, %v123
    %v188 = vpack.c.b16 %v132, %v128
    %v189 = vpack.c.b16 %v133, %v129
    %v190 = vpack.c.b16 %v134, %v130
    %v191 = vpack.c.b16 %v135, %v131
    %v192 = vpack.c.b16 %v140, %v136
    %v193 = vpack.c.b16 %v141, %v137
    %v194 = vpack.c.b16 %v142, %v138
    %v195 = vpack.c.b16 %v143, %v139
    %v196 = vpack.c.b16 %v148, %v144
    %v197 = vpack.c.b16 %v149, %v145
    %v198 = vpack.c.b16 %v150, %v146
    %v199 = vpack.c.b16 %v151, %v147
    %v200 = vpack.c.b16 %v156, %v152
    %v201 = vpack.c.b16 %v157, %v153
    %v202 = vpack.c.b16 %v158, %v154
    %v203 = vpack.c.b16 %v159, %v155
    %v204 = vpack.c.b16 %v164, %v160
    %v205 = vpack.c.b16 %v165, %v161
    %v206 = vpack.c.b16 %v166, %v162
    %v207 = vpack.c.b16 %v167, %v163
    %v208 = vpack.c.b16 %v172, %v168
    %v209 = vpack.c.b16 %v173, %v169
    %v210 = vpack.c.b16 %v174, %v170
    %v211 = vpack.c.b16 %v175, %v171
    %v212 = vpack.c.b16 %v180, %v176
    %v213 = vpack.c.b16 %v181, %v177
    %v214 = vpack.c.b16 %v182, %v178
    %v215 = vpack.c.b16 %v183, %v179
    %248 = vmatprep.subr.bf16.mxu0 %v213
    %249 = vmatpush1.bf16.msra.mxu0 %v212
    %250 = vmatprep.subr.bf16.mxu0 %v209
    %251 = vmatpush1.bf16.msra.mxu0 %v208
    %252 = vmatprep.subr.bf16.mxu0 %v205
    %253 = vmatpush1.bf16.msra.mxu0 %v204
    %254 = vmatprep.subr.bf16.mxu0 %v201
    %255 = vmatpush1.bf16.msra.mxu0 %v200
    %256 = vmatprep.subr.bf16.mxu0 %v197
    %257 = vmatpush1.bf16.msra.mxu0 %v196
    %258 = vmatprep.subr.bf16.mxu0 %v193
    %259 = vmatpush1.bf16.msra.mxu0 %v192
    %260 = vmatprep.subr.bf16.mxu0 %v189
    %261 = vmatpush1.bf16.msra.mxu0 %v188
    %262 = vmatprep.subr.bf16.mxu0 %v185
    %263 = vmatpush1.bf16.msra.mxu0 %v184
    %264 = vmatprep.subr.bf16.mxu0 0
    %265 = vmatpush2.bf16.msra.mxu0 0
    %266 = vmatprep.subr.bf16.mxu0 0
    %267 = vmatpush2.bf16.msra.mxu0 0
    %268 = vmatprep.subr.bf16.mxu0 0
    %269 = vmatpush2.bf16.msra.mxu0 0
    %270 = vmatprep.subr.bf16.mxu0 0
    %271 = vmatpush2.bf16.msra.mxu0 0
    %272 = vmatprep.subr.bf16.mxu0 0
    %273 = vmatpush2.bf16.msra.mxu0 0
    %274 = vmatprep.subr.bf16.mxu0 0
    %275 = vmatpush2.bf16.msra.mxu0 0
    %276 = vmatprep.subr.bf16.mxu0 0
    %277 = vmatpush2.bf16.msra.mxu0 0
    %278 = vmatprep.subr.bf16.mxu0 0
    %279 = vmatpush2.bf16.msra.mxu0 0
    %280 = vmatprep.mubr.bf16.mxu0 0
    %281 = vmatmul.mubr.bf16.gmra.mxu0 %v55
    %v282 = vpop.f32.mrf.mxu0
    %v283 = vadd.f32 %v46, %v282
    %v284 = vpop.f32.mrf.mxu0
    %v285 = vadd.f32 %v47, %v284
    %v286 = vpop.f32.mrf.mxu0
    %v287 = vpop.f32.mrf.mxu0
    %288 = vdwg.mxu0
    %289 = vmatprep.subr.bf16.mxu0 %v215
    %290 = vmatpush1.bf16.msra.mxu0 %v214
    %291 = vmatprep.subr.bf16.mxu0 %v211
    %292 = vmatpush1.bf16.msra.mxu0 %v210
    %293 = vmatprep.subr.bf16.mxu0 %v207
    %294 = vmatpush1.bf16.msra.mxu0 %v206
    %295 = vmatprep.subr.bf16.mxu0 %v203
    %296 = vmatpush1.bf16.msra.mxu0 %v202
    %297 = vmatprep.subr.bf16.mxu0 %v199
    %298 = vmatpush1.bf16.msra.mxu0 %v198
    %299 = vmatprep.subr.bf16.mxu0 %v195
    %300 = vmatpush1.bf16.msra.mxu0 %v194
    %301 = vmatprep.subr.bf16.mxu0 %v191
    %302 = vmatpush1.bf16.msra.mxu0 %v190
    %303 = vmatprep.subr.bf16.mxu0 %v187
    %304 = vmatpush1.bf16.msra.mxu0 %v186
    %305 = vmatprep.subr.bf16.mxu0 0
    %306 = vmatpush2.bf16.msra.mxu0 0
    %307 = vmatprep.subr.bf16.mxu0 0
    %308 = vmatpush2.bf16.msra.mxu0 0
    %309 = vmatprep.subr.bf16.mxu0 0
    %310 = vmatpush2.bf16.msra.mxu0 0
    %311 = vmatprep.subr.bf16.mxu0 0
    %312 = vmatpush2.bf16.msra.mxu0 0
    %313 = vmatprep.subr.bf16.mxu0 0
    %314 = vmatpush2.bf16.msra.mxu0 0
    %315 = vmatprep.subr.bf16.mxu0 0
    %316 = vmatpush2.bf16.msra.mxu0 0
    %317 = vmatprep.subr.bf16.mxu0 0
    %318 = vmatpush2.bf16.msra.mxu0 0
    %319 = vmatprep.subr.bf16.mxu0 0
    %320 = vmatpush2.bf16.msra.mxu0 0
    %321 = vmatprep.mubr.bf16.mxu0 0
    %322 = vmatmul.mubr.bf16.gmra.mxu0 %v55
    %v323 = vpop.f32.mrf.mxu0
    %v324 = vadd.f32 %v48, %v323
    %v325 = vpop.f32.mrf.mxu0
    %v326 = vadd.f32 %v49, %v325
    %v327 = vpop.f32.mrf.mxu0
    %v328 = vpop.f32.mrf.mxu0
    %329 = vdwg.mxu0
    %v330 = vxor.u32 %v283, 2147483648
    %v331 = vxor.u32 %v285, 2147483648
    %v332 = vxor.u32 %v324, 2147483648
    %v333 = vmul.f32 %v330, 1.442695
    %v334 = vpow.pop %v333
    %v335 = vmul.f32 %v331, 1.442695
    %v336 = vpow.pop %v335
    %v337 = vmul.f32 %v332, 1.442695
    %v338 = vpow.pop %v337
    %v339 = vadd.f32 %v334, 1.0
    %v340 = vadd.f32 %v336, 1.0
    %v341 = vadd.f32 %v338, 1.0
    %v342 = vrcp.pop %v339
    %v343 = vmul.f32 1.0, %v342
    %v344 = vrcp.pop %v340
    %v345 = vmul.f32 1.0, %v344
    %v346 = vrcp.pop %v341
    %v347 = vmul.f32 1.0, %v346
    %v348 = vtanh.pop %v326
    %v349 = vld [vmem:[#allocation3] sm:$0xff]
    %v350 = vmul.f32 %v343, %v349
    %v351 = vmul.f32 %v345, %v348
    %v352 = vadd.f32 %v350, %v351
    %v353 = vtanh.pop %v352
    %v354 = vmul.f32 %v347, %v353
    %355 = vst [vmem:[#allocation3] sm:$0xff] %v352
    %356 = vst [vmem:[#allocation2] sm:$0xff] %v354
    %s357 = scalar_lea.vmem [#allocation2], 8
    %v358 = vld [vmem:[%s357] sm:$0xff]
    %v359 = vpack.c.bf16 %v358, %v358
    %s360 = scalar_lea.vmem %s1, 256
    %v361 = vld [vmem:[%s360] sm:$0xff]
    %v362 = vld [vmem:[%s360 + $0x8] sm:$0xff]
    %v363 = vld [vmem:[%s360 + $0x10] sm:$0xff]
    %v364 = vld [vmem:[%s360 + $0x18] sm:$0xff]
    %v365 = vld [vmem:[%s360 + $0x20] sm:$0xff]
    %v366 = vld [vmem:[%s360 + $0x28] sm:$0xff]
    %v367 = vld [vmem:[%s360 + $0x30] sm:$0xff]
    %v368 = vld [vmem:[%s360 + $0x38] sm:$0xff]
    %v369 = vld [vmem:[%s360 + $0x40] sm:$0xff]
    %v370 = vld [vmem:[%s360 + $0x48] sm:$0xff]
    %v371 = vld [vmem:[%s360 + $0x50] sm:$0xff]
    %v372 = vld [vmem:[%s360 + $0x58] sm:$0xff]
    %v373 = vld [vmem:[%s360 + $0x60] sm:$0xff]
    %v374 = vld [vmem:[%s360 + $0x68] sm:$0xff]
    %v375 = vld [vmem:[%s360 + $0x70] sm:$0xff]
    %v376 = vld [vmem:[%s360 + $0x78] sm:$0xff]
    %v377 = vld [vmem:[%s360 + $0x80] sm:$0xff]
    %v378 = vld [vmem:[%s360 + $0x88] sm:$0xff]
    %v379 = vld [vmem:[%s360 + $0x90] sm:$0xff]
    %v380 = vld [vmem:[%s360 + $0x98] sm:$0xff]
    %v381 = vld [vmem:[%s360 + $0xa0] sm:$0xff]
    %v382 = vld [vmem:[%s360 + $0xa8] sm:$0xff]
    %v383 = vld [vmem:[%s360 + $0xb0] sm:$0xff]
    %v384 = vld [vmem:[%s360 + $0xb8] sm:$0xff]
    %v385 = vld [vmem:[%s360 + $0xc0] sm:$0xff]
    %v386 = vld [vmem:[%s360 + $0xc8] sm:$0xff]
    %v387 = vld [vmem:[%s360 + $0xd0] sm:$0xff]
    %v388 = vld [vmem:[%s360 + $0xd8] sm:$0xff]
    %v389 = vld [vmem:[%s360 + $0xe0] sm:$0xff]
    %v390 = vld [vmem:[%s360 + $0xe8] sm:$0xff]
    %v391 = vld [vmem:[%s360 + $0xf0] sm:$0xff]
    %v392 = vld [vmem:[%s360 + $0xf8] sm:$0xff]
    %v425 = vunpack.c.l.b16 %v361
    %v426 = vunpack.c.h.b16 %v361
    %v427 = vunpack.c.l.b16 %v362
    %v428 = vunpack.c.h.b16 %v362
    %v429 = vunpack.c.l.b16 %v363
    %v430 = vunpack.c.h.b16 %v363
    %v431 = vunpack.c.l.b16 %v364
    %v432 = vunpack.c.h.b16 %v364
    %v433 = vunpack.c.l.b16 %v365
    %v434 = vunpack.c.h.b16 %v365
    %v435 = vunpack.c.l.b16 %v366
    %v436 = vunpack.c.h.b16 %v366
    %v437 = vunpack.c.l.b16 %v367
    %v438 = vunpack.c.h.b16 %v367
    %v439 = vunpack.c.l.b16 %v368
    %v440 = vunpack.c.h.b16 %v368
    %v441 = vunpack.c.l.b16 %v369
    %v442 = vunpack.c.h.b16 %v369
    %v443 = vunpack.c.l.b16 %v370
    %v444 = vunpack.c.h.b16 %v370
    %v445 = vunpack.c.l.b16 %v371
    %v446 = vunpack.c.h.b16 %v371
    %v447 = vunpack.c.l.b16 %v372
    %v448 = vunpack.c.h.b16 %v372
    %v449 = vunpack.c.l.b16 %v373
    %v450 = vunpack.c.h.b16 %v373
    %v451 = vunpack.c.l.b16 %v374
    %v452 = vunpack.c.h.b16 %v374
    %v453 = vunpack.c.l.b16 %v375
    %v454 = vunpack.c.h.b16 %v375
    %v455 = vunpack.c.l.b16 %v376
    %v456 = vunpack.c.h.b16 %v376
    %v457 = vunpack.c.l.b16 %v377
    %v458 = vunpack.c.h.b16 %v377
    %v459 = vunpack.c.l.b16 %v378
    %v460 = vunpack.c.h.b16 %v378
    %v461 = vunpack.c.l.b16 %v379
    %v462 = vunpack.c.h.b16 %v379
    %v463 = vunpack.c.l.b16 %v380
    %v464 = vunpack.c.h.b16 %v380
    %v465 = vunpack.c.l.b16 %v381
    %v466 = vunpack.c.h.b16 %v381
    %v467 = vunpack.c.l.b16 %v382
    %v468 = vunpack.c.h.b16 %v382
    %v469 = vunpack.c.l.b16 %v383
    %v470 = vunpack.c.h.b16 %v383
    %v471 = vunpack.c.l.b16 %v384
    %v472 = vunpack.c.h.b16 %v384
    %v473 = vunpack.c.l.b16 %v385
    %v474 = vunpack.c.h.b16 %v385
    %v475 = vunpack.c.l.b16 %v386
    %v476 = vunpack.c.h.b16 %v386
    %v477 = vunpack.c.l.b16 %v387
    %v478 = vunpack.c.h.b16 %v387
    %v479 = vunpack.c.l.b16 %v388
    %v480 = vunpack.c.h.b16 %v388
    %v481 = vunpack.c.l.b16 %v389
    %v482 = vunpack.c.h.b16 %v389
    %v483 = vunpack.c.l.b16 %v390
    %v484 = vunpack.c.h.b16 %v390
    %v485 = vunpack.c.l.b16 %v391
    %v486 = vunpack.c.h.b16 %v391
    %v487 = vunpack.c.l.b16 %v392
    %v488 = vunpack.c.h.b16 %v392
    %v489 = vpack.c.b16 %v429, %v425
    %v490 = vpack.c.b16 %v430, %v426
    %v491 = vpack.c.b16 %v431, %v427
    %v492 = vpack.c.b16 %v432, %v428
    %v493 = vpack.c.b16 %v437, %v433
    %v494 = vpack.c.b16 %v438, %v434
    %v495 = vpack.c.b16 %v439, %v435
    %v496 = vpack.c.b16 %v440, %v436
    %v497 = vpack.c.b16 %v445, %v441
    %v498 = vpack.c.b16 %v446, %v442
    %v499 = vpack.c.b16 %v447, %v443
    %v500 = vpack.c.b16 %v448, %v444
    %v501 = vpack.c.b16 %v453, %v449
    %v502 = vpack.c.b16 %v454, %v450
    %v503 = vpack.c.b16 %v455, %v451
    %v504 = vpack.c.b16 %v456, %v452
    %v505 = vpack.c.b16 %v461, %v457
    %v506 = vpack.c.b16 %v462, %v458
    %v507 = vpack.c.b16 %v463, %v459
    %v508 = vpack.c.b16 %v464, %v460
    %v509 = vpack.c.b16 %v469, %v465
    %v510 = vpack.c.b16 %v470, %v466
    %v511 = vpack.c.b16 %v471, %v467
    %v512 = vpack.c.b16 %v472, %v468
    %v513 = vpack.c.b16 %v477, %v473
    %v514 = vpack.c.b16 %v478, %v474
    %v515 = vpack.c.b16 %v479, %v475
    %v516 = vpack.c.b16 %v480, %v476
    %v517 = vpack.c.b16 %v485, %v481
    %v518 = vpack.c.b16 %v486, %v482
    %v519 = vpack.c.b16 %v487, %v483
    %v520 = vpack.c.b16 %v488, %v484
    %553 = vmatprep.subr.bf16.mxu0 %v518
    %554 = vmatpush1.bf16.msra.mxu0 %v517
    %555 = vmatprep.subr.bf16.mxu0 %v514
    %556 = vmatpush1.bf16.msra.mxu0 %v513
    %557 = vmatprep.subr.bf16.mxu0 %v510
    %558 = vmatpush1.bf16.msra.mxu0 %v509
    %559 = vmatprep.subr.bf16.mxu0 %v506
    %560 = vmatpush1.bf16.msra.mxu0 %v505
    %561 = vmatprep.subr.bf16.mxu0 %v502
    %562 = vmatpush1.bf16.msra.mxu0 %v501
    %563 = vmatprep.subr.bf16.mxu0 %v498
    %564 = vmatpush1.bf16.msra.mxu0 %v497
    %565 = vmatprep.subr.bf16.mxu0 %v494
    %566 = vmatpush1.bf16.msra.mxu0 %v493
    %567 = vmatprep.subr.bf16.mxu0 %v490
    %568 = vmatpush1.bf16.msra.mxu0 %v489
    %569 = vmatprep.subr.bf16.mxu0 0
    %570 = vmatpush2.bf16.msra.mxu0 0
    %571 = vmatprep.subr.bf16.mxu0 0
    %572 = vmatpush2.bf16.msra.mxu0 0
    %573 = vmatprep.subr.bf16.mxu0 0
    %574 = vmatpush2.bf16.msra.mxu0 0
    %575 = vmatprep.subr.bf16.mxu0 0
    %576 = vmatpush2.bf16.msra.mxu0 0
    %577 = vmatprep.subr.bf16.mxu0 0
    %578 = vmatpush2.bf16.msra.mxu0 0
    %579 = vmatprep.subr.bf16.mxu0 0
    %580 = vmatpush2.bf16.msra.mxu0 0
    %581 = vmatprep.subr.bf16.mxu0 0
    %582 = vmatpush2.bf16.msra.mxu0 0
    %583 = vmatprep.subr.bf16.mxu0 0
    %584 = vmatpush2.bf16.msra.mxu0 0
    %585 = vmatprep.mubr.bf16.mxu0 0
    %586 = vmatmul.mubr.bf16.gmra.mxu0 %v359
    %v587 = vpop.f32.mrf.mxu0
    %v588 = vadd.f32 %v50, %v587
    %v589 = vpop.f32.mrf.mxu0
    %v590 = vadd.f32 %v51, %v589
    %v591 = vpop.f32.mrf.mxu0
    %v592 = vpop.f32.mrf.mxu0
    %593 = vdwg.mxu0
    %594 = vmatprep.subr.bf16.mxu0 %v520
    %595 = vmatpush1.bf16.msra.mxu0 %v519
    %596 = vmatprep.subr.bf16.mxu0 %v516
    %597 = vmatpush1.bf16.msra.mxu0 %v515
    %598 = vmatprep.subr.bf16.mxu0 %v512
    %599 = vmatpush1.bf16.msra.mxu0 %v511
    %600 = vmatprep.subr.bf16.mxu0 %v508
    %601 = vmatpush1.bf16.msra.mxu0 %v507
    %602 = vmatprep.subr.bf16.mxu0 %v504
    %603 = vmatpush1.bf16.msra.mxu0 %v503
    %604 = vmatprep.subr.bf16.mxu0 %v500
    %605 = vmatpush1.bf16.msra.mxu0 %v499
    %606 = vmatprep.subr.bf16.mxu0 %v496
    %607 = vmatpush1.bf16.msra.mxu0 %v495
    %608 = vmatprep.subr.bf16.mxu0 %v492
    %609 = vmatpush1.bf16.msra.mxu0 %v491
    %610 = vmatprep.subr.bf16.mxu0 0
    %611 = vmatpush2.bf16.msra.mxu0 0
    %612 = vmatprep.subr.bf16.mxu0 0
    %613 = vmatpush2.bf16.msra.mxu0 0
    %614 = vmatprep.subr.bf16.mxu0 0
    %615 = vmatpush2.bf16.msra.mxu0 0
    %616 = vmatprep.subr.bf16.mxu0 0
    %617 = vmatpush2.bf16.msra.mxu0 0
    %618 = vmatprep.subr.bf16.mxu0 0
    %619 = vmatpush2.bf16.msra.mxu0 0
    %620 = vmatprep.subr.bf16.mxu0 0
    %621 = vmatpush2.bf16.msra.mxu0 0
    %622 = vmatprep.subr.bf16.mxu0 0
    %623 = vmatpush2.bf16.msra.mxu0 0
    %624 = vmatprep.subr.bf16.mxu0 0
    %625 = vmatpush2.bf16.msra.mxu0 0
    %626 = vmatprep.mubr.bf16.mxu0 0
    %627 = vmatmul.mubr.bf16.gmra.mxu0 %v359
    %v628 = vpop.f32.mrf.mxu0
    %v629 = vadd.f32 %v52, %v628
    %v630 = vpop.f32.mrf.mxu0
    %v631 = vadd.f32 %v53, %v630
    %v632 = vpop.f32.mrf.mxu0
    %v633 = vpop.f32.mrf.mxu0
    %634 = vdwg.mxu0
    %v635 = vxor.u32 %v588, 2147483648
    %v636 = vxor.u32 %v590, 2147483648
    %v637 = vxor.u32 %v629, 2147483648
    %v638 = vmul.f32 %v635, 1.442695
    %v639 = vpow.pop %v638
    %v640 = vmul.f32 %v636, 1.442695
    %v641 = vpow.pop %v640
    %v642 = vmul.f32 %v637, 1.442695
    %v643 = vpow.pop %v642
    %v644 = vadd.f32 %v639, 1.0
    %v645 = vadd.f32 %v641, 1.0
    %v646 = vadd.f32 %v643, 1.0
    %v647 = vrcp.pop %v644
    %v648 = vmul.f32 1.0, %v647
    %v649 = vrcp.pop %v645
    %v650 = vmul.f32 1.0, %v649
    %v651 = vrcp.pop %v646
    %v652 = vmul.f32 1.0, %v651
    %v653 = vtanh.pop %v631
    %s654 = scalar_lea.vmem [#allocation3], 8
    %v655 = vld [vmem:[%s654] sm:$0xff]
    %v656 = vmul.f32 %v648, %v655
    %v657 = vmul.f32 %v650, %v653
    %v658 = vadd.f32 %v656, %v657
    %v659 = vtanh.pop %v658
    %v660 = vmul.f32 %v652, %v659
    %661 = vst [vmem:[%s654] sm:$0xff] %v658
    %662 = vst [vmem:[%s357] sm:$0xff] %v660
    %v663 = vld [vmem:[%s357] sm:$0xff]
    %v664 = vpack.c.bf16 %v663, %v663
    %s665 = smul.addr %s34, 4
    %s666 = scalar_lea.vmem %s4, %s665
    %667 = vst [vmem:[%s666] sm:$0xf] %v664
  $region26: #{_lambda_.4} parent=0 // loop_footer
    %s38 = sadd.s32 1, %s34
  $region27: #{_lambda_.4} parent=0 // loop_footer_branch
    %33 = sbr.rel target = $region23
  $region28: #{_lambda_.4} parent=0 // loop_exit
    _
  // Predicated region
  $region29: #{_lambda_.4} parent=0 // pred_check
    %p668 = pneg %p21
  $region30: #{_lambda_.4} parent=0 // pred_check_branch
    %670 = sbr.rel (%p668) target = $region32
  $region31: #{_lambda_.4} parent=0 // pred_region
    %v671 = vld [vmem:[#allocation2] sm:$0xff]
    %v672 = vld [vmem:[#allocation2 + $0x8] sm:$0xff]
    %673 = vst [vmem:[%s5] sm:$0xff] %v671
    %674 = vst [vmem:[%s5 + $0x8] sm:$0xff] %v672
    %v675 = vld [vmem:[#allocation3] sm:$0xff]
    %v676 = vld [vmem:[#allocation3 + $0x8] sm:$0xff]
    %677 = vst [vmem:[%s6] sm:$0xff] %v675
    %678 = vst [vmem:[%s6 + $0x8] sm:$0xff] %v676
  $region32: #{_lambda_.4} parent=0 // pred_fallthru
    _
  // Predicated region
  $region33: #{_lambda_.4} parent=0 // pred_check
    _
  $region34: #{_lambda_.4} parent=0 // pred_check_branch
    %680 = sbr.rel (0) target = $region36
  $region35: #{_lambda_.4} parent=0 // pred_region
    _
  $region36: #{_lambda_.4} parent=0 // pred_fallthru
    _
  // Predicated region
  $region37: #{_lambda_.4} parent=0 // pred_check
    _
  $region38: #{_lambda_.4} parent=0 // pred_check_branch
    %682 = sbr.rel (0) target = $region40
  $region39: #{_lambda_.4} parent=0 // pred_region
    _
  $region40: #{_lambda_.4} parent=0 // pred_fallthru
    _
  // Predicated region
  $region41: #{_lambda_.4} parent=0 // pred_check
    _
  $region42: #{_lambda_.4} parent=0 // pred_check_branch
    %684 = sbr.rel (0) target = $region44
  $region43: #{_lambda_.4} parent=0 // pred_region
    _
  $region44: #{_lambda_.4} parent=0 // pred_fallthru
    _
  // Predicated region
  $region45: #{_lambda_.4} parent=0 // pred_check
    _
  $region46: #{_lambda_.4} parent=0 // pred_check_branch
    %686 = sbr.rel (0) target = $region48
  $region47: #{_lambda_.4} parent=0 // pred_region
    _
  $region48: #{_lambda_.4} parent=0 // pred_fallthru
    _
  // Predicated region
  $region49: #{_lambda_.4} parent=0 // pred_check
    _
  $region50: #{_lambda_.4} parent=0 // pred_check_branch
    %688 = sbr.rel (0) target = $region52
  $region51: #{_lambda_.4} parent=0 // pred_region
    _
  $region52: #{_lambda_.4} parent=0 // pred_fallthru
    _
  // Predicated region
  $region53: #{_lambda_.4} parent=0 // pred_check
    _
  $region54: #{_lambda_.4} parent=0 // pred_check_branch
    %690 = sbr.rel (0) target = $region56
  $region55: #{_lambda_.4} parent=0 // pred_region
    _
  $region56: #{_lambda_.4} parent=0 // pred_fallthru
    _

</llo_original>
